<compile_context>
chip_gen: v7x
topology: tpu7x:2x2x1
jax: 0.10.0
libtpu: 0.0.40
codegen_flags: <defaults>
</compile_context>

<pallas_src>
import functools

import jax
import jax.numpy as jnp
import numpy as np
from jax import lax
from jax.experimental import pallas as pl
from jax.experimental.pallas import tpu as pltpu


# ----------------------------- Pallas kernel --------------------------------
def _rnn_lstm_kernel(ids_ref, mask_ref, w_vih_ref, b_ref, w_hh_ref,
                     w_out_ref, b_out_ref, out_ref, xg_ref, h_all_ref,
                     *, seq_len, batch_pad, hidden):
    # ids_ref   : (T*Bp, 1)  int32   token ids, time-major (row = t*Bp + b)
    # mask_ref  : (T*Bp, 1)  f32     1.0 where t < length[b] + 1, else 0.0
    # w_vih_ref : (V, 4H)    f32     emb @ W_ih^T (embedding folded into W_ih)
    # b_ref     : (1, 4H)    f32     b_ih + b_hh
    # w_hh_ref  : (H, 4H)    f32     W_hh^T
    # w_out_ref : (H, V)     f32     W_out^T      b_out_ref : (1, V)
    # out_ref   : (T*Bp, V)  f32     log-probabilities
    # xg_ref    : (T*Bp, 4H) f32     scratch: input-side gate preactivations
    # h_all_ref : (T*Bp, H)  f32     scratch: masked hidden state, flat rows
    T, Bp, H = seq_len, batch_pad, hidden
    V = w_vih_ref.shape[0]
    rows = T * Bp

    # ---- fused embedding + input-side gate preactivations (ONE matmul) ------
    # one_hot @ (emb @ W_ih^T) == (one_hot @ emb) @ W_ih^T; pad row of emb is
    # zero, so pad tokens contribute only the bias — identical semantics.
    vocab_iota = lax.broadcasted_iota(jnp.int32, (rows, V), 1)
    one_hot = (vocab_iota == ids_ref[...]).astype(jnp.float32)
    xg_ref[...] = jnp.dot(one_hot, w_vih_ref[...],
                          preferred_element_type=jnp.float32) + b_ref[...]

    # ---- constants hoisted out of the serial loop ---------------------------
    w_hh = w_hh_ref[...]                              # resident in vregs
    lane = lax.broadcasted_iota(jnp.int32, (Bp, 4 * H), 1)
    is_g = (lane >= 2 * H) & (lane < 3 * H)           # g gate -> tanh, rest sigmoid
    pre_scale = jnp.where(is_g, 1.0, 0.5)             # sigmoid(x)=0.5*(tanh(x/2)+1)

    # ---- sequential LSTM recurrence (only h @ W_hh is inherently serial) ----
    def step(t, carry):
        h, c = carry                                  # (Bp, H) each
        r0 = pl.multiple_of(t * Bp, Bp)               # Bp multiple of 8 -> aligned
        gates = xg_ref[pl.ds(r0, Bp), :] + jnp.dot(
            h, w_hh, preferred_element_type=jnp.float32)     # (Bp, 4H) i|f|g|o
        # full-width activation: one EUP tanh pass over the whole vreg
        th = jnp.tanh(gates * pre_scale)
        act = jnp.where(is_g, th, 0.5 * th + 0.5)
        i_g = act[:, 0 * H:1 * H]
        f_g = act[:, 1 * H:2 * H]
        g_g = act[:, 2 * H:3 * H]
        o_g = act[:, 3 * H:4 * H]
        c_new = f_g * c + i_g * g_g
        h_new = o_g * jnp.tanh(c_new)
        # validity mask fused into the store (pack/pad equivalence); the
        # unmasked state keeps flowing through the recurrence, which is fine
        # because nothing past length+1 of a sequence is ever observed.
        h_all_ref[pl.ds(r0, Bp), :] = h_new * mask_ref[pl.ds(r0, Bp), :]
        return h_new, c_new

    h0 = jnp.zeros((Bp, H), jnp.float32)
    c0 = jnp.zeros((Bp, H), jnp.float32)
    lax.fori_loop(0, T, step, (h0, c0), unroll=True)

    # ---- one lane-dense projection + log_softmax over all rows --------------
    logits = jnp.dot(h_all_ref[...], w_out_ref[...],
                     preferred_element_type=jnp.float32) + b_out_ref[...]
    m = jnp.max(logits, axis=-1, keepdims=True)
    shifted = logits - m
    lse = jnp.log(jnp.sum(jnp.exp(shifted), axis=-1, keepdims=True))
    out_ref[...] = shifted - lse


# -------------------------------- wrapper ------------------------------------
def rnn_forward(input_seq, length, kernel_params, *, hidden_size, pad_idx):
    """input_seq: (B, T_in) int32 token ids; length: (B,) int32.
    Returns log-probs of shape (B, max(length)+1, vocab), like the PyTorch module."""
    w_vih_k, b_k, w_hh_k, w_out_k, b_out_k = kernel_params
    B, T_in = input_seq.shape
    V = w_vih_k.shape[0]
    H = hidden_size

    # pad_packed_sequence output length (concrete host value; only the returned
    # array shape depends on it — the kernel itself uses a bucketed length).
    T_actual = int(jnp.max(length)) + 1
    assert T_actual <= T_in, "length + 1 must not exceed the padded sequence length"

    # bucket kernel timesteps to a multiple of 8 -> no retrace per max-length;
    # extra steps are fully masked out.
    T_k = max(8, ((T_actual + 7) // 8) * 8)
    Bp = max(8, ((B + 7) // 8) * 8)                   # sublane-align the batch dim
    rows = T_k * Bp

    # time-major, batch-padded ids: row r = t*Bp + b
    ids_pad = jnp.full((Bp, T_k), pad_idx, dtype=jnp.int32)
    n_copy = min(T_actual, T_in)
    ids_pad = ids_pad.at[:B, :n_copy].set(input_seq[:, :n_copy].astype(jnp.int32))
    ids_tb = jnp.transpose(ids_pad, (1, 0)).reshape(rows, 1)

    # validity mask: (t, b) valid iff t < length[b] + 1  (== pack/pad semantics)
    eff_len = jnp.zeros((Bp,), jnp.int32).at[:B].set(length.astype(jnp.int32) + 1)
    t_idx = jnp.arange(T_k, dtype=jnp.int32)[:, None]
    mask = (t_idx < eff_len[None, :]).astype(jnp.float32).reshape(rows, 1)

    kernel = functools.partial(_rnn_lstm_kernel, seq_len=T_k, batch_pad=Bp,
                               hidden=H)

    flops = 2 * (rows * V * 4 * H + T_k * Bp * H * 4 * H + rows * H * V)
    transcendentals = T_k * Bp * 5 * H + rows * V + rows
    bytes_accessed = 4 * (2 * rows + V * 4 * H + 4 * H
                          + H * 4 * H + H * V + V + rows * V)

    # actual VMEM footprint (f32, padded to (8,128) tiles) + generous headroom,
    # instead of a blanket 32 MiB.
    def _padded_bytes(shape):
        s = list(shape)
        s[-1] = ((s[-1] + 127) // 128) * 128
        if len(s) >= 2:
            s[-2] = ((s[-2] + 7) // 8) * 8
        n = 1
        for d in s:
            n *= d
        return n * 4
    vmem_bytes = (_padded_bytes((rows, 1)) * 2 + _padded_bytes((V, 4 * H))
                  + _padded_bytes((1, 4 * H)) + _padded_bytes((H, 4 * H))
                  + _padded_bytes((H, V)) + _padded_bytes((1, V))
                  + _padded_bytes((rows, V))
                  + _padded_bytes((rows, 4 * H)) + _padded_bytes((rows, H)))
    vmem_limit = min(64 * 1024 * 1024, max(4 * 1024 * 1024, 4 * vmem_bytes))

    out = pl.pallas_call(
        kernel,
        out_shape=jax.ShapeDtypeStruct((rows, V), jnp.float32),
        grid_spec=pltpu.PrefetchScalarGridSpec(
            num_scalar_prefetch=0,
            grid=(1,),
            in_specs=[
                pl.BlockSpec((rows, 1), lambda i: (0, 0)),       # ids
                pl.BlockSpec((rows, 1), lambda i: (0, 0)),       # mask
                pl.BlockSpec((V, 4 * H), lambda i: (0, 0)),      # emb @ W_ih^T
                pl.BlockSpec((1, 4 * H), lambda i: (0, 0)),      # b_ih + b_hh
                pl.BlockSpec((H, 4 * H), lambda i: (0, 0)),      # W_hh^T
                pl.BlockSpec((H, V), lambda i: (0, 0)),          # W_out^T
                pl.BlockSpec((1, V), lambda i: (0, 0)),          # b_out
            ],
            out_specs=pl.BlockSpec((rows, V), lambda i: (0, 0)),
            scratch_shapes=[
                pltpu.VMEM((rows, 4 * H), jnp.float32),          # xg (all steps)
                pltpu.VMEM((rows, H), jnp.float32),              # masked h, flat
            ],
        ),
        compiler_params=pltpu.CompilerParams(
            dimension_semantics=("arbitrary",),
            vmem_limit_bytes=vmem_limit,
        ),
        cost_estimate=pl.CostEstimate(flops=flops,
                                      transcendentals=transcendentals,
                                      bytes_accessed=bytes_accessed),
    )(ids_tb, mask, w_vih_k, b_k, w_hh_k, w_out_k, b_out_k)

    logp = out.reshape(T_k, Bp, V)[:T_actual, :B, :]
    return jnp.transpose(logp, (1, 0, 2))             # (B, T_actual, V)


# -------------------------- parameter construction ---------------------------
def make_params(key, vocab_size, embed_size, hidden_size, pad_idx):
    """Deterministic synthetic parameters in PyTorch layout (for the reference)
    and kernel layout (embedding folded into W_ih, transposed weights, fused biases)."""
    ks = jax.random.split(key, 7)
    H = hidden_size
    emb = 0.5 * jax.random.normal(ks[0], (vocab_size, embed_size), jnp.float32)
    emb = emb.at[pad_idx].set(0.0)                   # nn.Embedding(padding_idx)
    w_ih = 0.3 * jax.random.normal(ks[1], (4 * H, embed_size), jnp.float32)
    w_hh = 0.3 * jax.random.normal(ks[2], (4 * H, H), jnp.float32)
    b_ih = 0.1 * jax.random.normal(ks[3], (4 * H,), jnp.float32)
    b_hh = 0.1 * jax.random.normal(ks[4], (4 * H,), jnp.float32)
    w_out = 0.5 * jax.random.normal(ks[5], (vocab_size, H), jnp.float32)
    b_out = 0.1 * jax.random.normal(ks[6], (vocab_size,), jnp.float32)

    pt_params = (emb, w_ih, w_hh, b_ih, b_hh, w_out, b_out)
    # fold the embedding table into the input-side LSTM weights: (V, 4H)
    w_vih = jnp.dot(emb, jnp.transpose(w_ih))
    kernel_params = (w_vih, (b_ih + b_hh)[None, :],
                     jnp.transpose(w_hh),
                     jnp.transpose(w_out), b_out[None, :])
    return kernel_params, pt_params


# ----------------------- NumPy float64 reference -----------------------------
def reference_forward(input_seq, length, pt_params):
    """Exact float64 reference with PyTorch pack/pad + LSTM + log_softmax semantics."""
    emb, w_ih, w_hh, b_ih, b_hh, w_out, b_out = [
        np.asarray(p, np.float64) for p in pt_params]
    ids = np.asarray(input_seq)
    lens = np.asarray(length)
    B, _ = ids.shape
    T_out = int(lens.max()) + 1
    H = w_hh.shape[1]

    x = emb[ids[:, :T_out]]                                   # (B, T_out, E)
    sig = lambda z: 1.0 / (1.0 + np.exp(-z))
    h = np.zeros((B, H)); c = np.zeros((B, H))
    h_all = np.zeros((B, T_out, H))
    for t in range(T_out):
        gates = x[:, t] @ w_ih.T + b_ih + h @ w_hh.T + b_hh   # i|f|g|o
        i_g = sig(gates[:, 0:H]); f_g = sig(gates[:, H:2 * H])
        g_g = np.tanh(gates[:, 2 * H:3 * H]); o_g = sig(gates[:, 3 * H:4 * H])
        c = f_g * c + i_g * g_g
        h = o_g * np.tanh(c)
        h_all[:, t] = h
    # pack/pad: outputs past length+1 are zero before the output Linear
    valid = (np.arange(T_out)[None, :] < (lens[:, None] + 1)).astype(np.float64)
    logits = (h_all * valid[:, :, None]) @ w_out.T + b_out
    m = logits.max(-1, keepdims=True)
    return logits - m - np.log(np.exp(logits - m).sum(-1, keepdims=True))


if __name__ == "__main__":
    # RNN(vocab_size=128, embed_size=32, time_step=12, hidden_size=32,
    #     dropout_rate=0.5, bos_idx=1, eos_idx=2, pad_idx=0), eval mode.
    vocab_size, embed_size, hidden_size = 128, 32, 32
    time_step, dropout_rate = 12, 0.5
    bos_idx, eos_idx, pad_idx = 1, 2, 0
    B = 4

    key = jax.random.PRNGKey(0)
    k_tok, k_par = jax.random.split(key)

    lengths = jnp.array([7, 5, 3, 7], jnp.int32)          # max(len)+1 = 8 <= 12
    tok = jax.random.randint(k_tok, (B, time_step), 3, vocab_size, dtype=jnp.int32)
    valid = jnp.arange(time_step, dtype=jnp.int32)[None, :] <= lengths[:, None]
    input_seq = jnp.where(valid, tok, pad_idx).astype(jnp.int32)

    kernel_params, pt_params = make_params(k_par, vocab_size, embed_size,
                                           hidden_size, pad_idx)

    logp = rnn_forward(input_seq, lengths, kernel_params,
                       hidden_size=hidden_size, pad_idx=pad_idx)
    logp = jax.block_until_ready(logp)

    T_out = int(jnp.max(lengths)) + 1
    assert logp.shape == (B, T_out, vocab_size)

    # every row must be a valid log-probability distribution
    row_sums = jnp.sum(jnp.exp(logp), axis=-1)
    assert jnp.allclose(row_sums, 1.0, atol=1e-3), "log_softmax rows don't normalize"

    ref = reference_forward(input_seq, lengths, pt_params)
    err = np.max(np.abs(np.asarray(logp, np.float64) - ref))
    assert np.allclose(np.asarray(logp), ref, atol=2e-2, rtol=2e-2), (
        f"mismatch vs float64 reference, max abs err = {err}")

    print("KERNEL_OK")
</pallas_src>

<mosaic_0001>
module attributes {stable_mosaic.version = 11 : i64} {
  func.func @_rnn_lstm_kernel(%arg0: i32, %arg1: memref<64x1xi32, #tpu.memory_space<vmem>>, %arg2: memref<64x1xf32, #tpu.memory_space<vmem>>, %arg3: memref<128x128xf32, #tpu.memory_space<vmem>>, %arg4: memref<1x128xf32, #tpu.memory_space<vmem>>, %arg5: memref<32x128xf32, #tpu.memory_space<vmem>>, %arg6: memref<32x128xf32, #tpu.memory_space<vmem>>, %arg7: memref<1x128xf32, #tpu.memory_space<vmem>>, %arg8: memref<64x128xf32, #tpu.memory_space<vmem>>, %arg9: memref<64x128xf32, #tpu.memory_space<vmem>>, %arg10: memref<64x32xf32, #tpu.memory_space<vmem>>) attributes {dimension_semantics = [#tpu.dimension_semantics<arbitrary>], iteration_bounds = array<i64: 1>, scalar_prefetch = 0 : i64, scratch_operands = 2 : i64, tpu.core_type = #tpu.core_type<tc>, window_params = [{pipeline_mode = #tpu.pipeline_mode<synchronous>, transform_indices = @transform_0, window_bounds = array<i64: 64, 1>}, {pipeline_mode = #tpu.pipeline_mode<synchronous>, transform_indices = @transform_1, window_bounds = array<i64: 64, 1>}, {pipeline_mode = #tpu.pipeline_mode<synchronous>, transform_indices = @transform_2, window_bounds = array<i64: 128, 128>}, {pipeline_mode = #tpu.pipeline_mode<synchronous>, transform_indices = @transform_3, window_bounds = array<i64: 1, 128>}, {pipeline_mode = #tpu.pipeline_mode<synchronous>, transform_indices = @transform_4, window_bounds = array<i64: 32, 128>}, {pipeline_mode = #tpu.pipeline_mode<synchronous>, transform_indices = @transform_5, window_bounds = array<i64: 32, 128>}, {pipeline_mode = #tpu.pipeline_mode<synchronous>, transform_indices = @transform_6, window_bounds = array<i64: 1, 128>}, {pipeline_mode = #tpu.pipeline_mode<synchronous>, transform_indices = @transform_7, window_bounds = array<i64: 64, 128>}]} {
    %0 = tpu.iota {dimensions = array<i32: 1>} : vector<64x128xi32>
    %c0 = arith.constant 0 : index
    %c0_0 = arith.constant 0 : index
    %1 = vector.load %arg1[%c0, %c0_0] : memref<64x1xi32, #tpu.memory_space<vmem>>, vector<64x1xi32>
    %2 = vector.broadcast %1 : vector<64x1xi32> to vector<64x128xi32>
    %3 = arith.cmpi eq, %0, %2 : vector<64x128xi32>
    %4 = arith.extui %3 : vector<64x128xi1> to vector<64x128xi32>
    %5 = arith.sitofp %4 : vector<64x128xi32> to vector<64x128xf32>
    %c0_1 = arith.constant 0 : index
    %c0_2 = arith.constant 0 : index
    %6 = vector.load %arg3[%c0_1, %c0_2] : memref<128x128xf32, #tpu.memory_space<vmem>>, vector<128x128xf32>
    %cst = arith.constant dense<0.000000e+00> : vector<64x128xf32>
    %7 = tpu.matmul %5, %6, %cst {dimension_numbers = #tpu.dot_dimension_numbers<[1], [0], [0], [1], [0, 0, 1, 1], [], []>} : vector<64x128xf32>, vector<128x128xf32>, vector<64x128xf32> -> vector<64x128xf32>
    %c0_3 = arith.constant 0 : index
    %c0_4 = arith.constant 0 : index
    %8 = vector.load %arg4[%c0_3, %c0_4] : memref<1x128xf32, #tpu.memory_space<vmem>>, vector<1x128xf32>
    %9 = vector.broadcast %8 : vector<1x128xf32> to vector<64x128xf32>
    %10 = arith.addf %7, %9 : vector<64x128xf32>
    %c0_5 = arith.constant 0 : index
    %c0_6 = arith.constant 0 : index
    %11 = vector.load %arg9[%c0_5, %c0_6] : memref<64x128xf32, #tpu.memory_space<vmem>>, vector<64x128xf32>
    tpu.vector_store %arg9[%c0_5, %c0_6], %10 {strides = array<i32>} : memref<64x128xf32, #tpu.memory_space<vmem>>, vector<64x128xf32>,
    %c0_7 = arith.constant 0 : index
    %c0_8 = arith.constant 0 : index
    %12 = vector.load %arg5[%c0_7, %c0_8] : memref<32x128xf32, #tpu.memory_space<vmem>>, vector<32x128xf32>
    %13 = tpu.iota {dimensions = array<i32: 1>} : vector<8x128xi32>
    %c64_i32 = arith.constant 64 : i32
    %14 = vector.broadcast %c64_i32 : i32 to vector<8x128xi32>
    %15 = arith.cmpi sge, %13, %14 : vector<8x128xi32>
    %c96_i32 = arith.constant 96 : i32
    %16 = vector.broadcast %c96_i32 : i32 to vector<8x128xi32>
    %17 = arith.cmpi slt, %13, %16 : vector<8x128xi32>
    %18 = arith.andi %15, %17 : vector<8x128xi1>
    %cst_9 = arith.constant 1.000000e+00 : f32
    %cst_10 = arith.constant 5.000000e-01 : f32
    %19 = vector.broadcast %cst_9 : f32 to vector<8x128xf32>
    %20 = vector.broadcast %cst_10 : f32 to vector<8x128xf32>
    %21 = arith.select %18, %19, %20 : vector<8x128xi1>, vector<8x128xf32>
    %cst_11 = arith.constant 0.000000e+00 : f32
    %22 = vector.broadcast %cst_11 : f32 to vector<8x32xf32>
    %cst_12 = arith.constant 0.000000e+00 : f32
    %23 = vector.broadcast %cst_12 : f32 to vector<8x32xf32>
    %c0_i32 = arith.constant 0 : i32
    %c8_i32 = arith.constant 8 : i32
    %24 = arith.muli %c0_i32, %c8_i32 : i32
    %25 = tpu.assume_multiple %24, 8 : i32
    %26 = arith.index_cast %25 : i32 to index
    %c0_13 = arith.constant 0 : index
    %27 = vector.load %arg9[%26, %c0_13] : memref<64x128xf32, #tpu.memory_space<vmem>>, vector<8x128xf32>
    %cst_14 = arith.constant dense<0.000000e+00> : vector<8x128xf32>
    %28 = tpu.matmul %22, %12, %cst_14 {dimension_numbers = #tpu.dot_dimension_numbers<[1], [0], [0], [1], [0, 0, 1, 1], [], []>} : vector<8x32xf32>, vector<32x128xf32>, vector<8x128xf32> -> vector<8x128xf32>
    %29 = arith.addf %27, %28 : vector<8x128xf32>
    %30 = arith.mulf %29, %21 : vector<8x128xf32>
    %31 = math.tanh %30 : vector<8x128xf32>
    %cst_15 = arith.constant 5.000000e-01 : f32
    %32 = vector.broadcast %cst_15 : f32 to vector<8x128xf32>
    %33 = arith.mulf %32, %31 : vector<8x128xf32>
    %cst_16 = arith.constant 5.000000e-01 : f32
    %34 = vector.broadcast %cst_16 : f32 to vector<8x128xf32>
    %35 = arith.addf %33, %34 : vector<8x128xf32>
    %36 = arith.select %18, %31, %35 : vector<8x128xi1>, vector<8x128xf32>
    %37 = vector.extract_strided_slice %36 {offsets = [0, 0], sizes = [8, 32], strides = [1, 1]} : vector<8x128xf32> to vector<8x32xf32>
    %38 = vector.extract_strided_slice %36 {offsets = [0, 32], sizes = [8, 32], strides = [1, 1]} : vector<8x128xf32> to vector<8x32xf32>
    %39 = vector.extract_strided_slice %36 {offsets = [0, 64], sizes = [8, 32], strides = [1, 1]} : vector<8x128xf32> to vector<8x32xf32>
    %40 = vector.extract_strided_slice %36 {offsets = [0, 96], sizes = [8, 32], strides = [1, 1]} : vector<8x128xf32> to vector<8x32xf32>
    %41 = arith.mulf %38, %23 : vector<8x32xf32>
    %42 = arith.mulf %37, %39 : vector<8x32xf32>
    %43 = arith.addf %41, %42 : vector<8x32xf32>
    %44 = math.tanh %43 : vector<8x32xf32>
    %45 = arith.mulf %40, %44 : vector<8x32xf32>
    %46 = arith.index_cast %25 : i32 to index
    %c0_17 = arith.constant 0 : index
    %47 = vector.load %arg2[%46, %c0_17] : memref<64x1xf32, #tpu.memory_space<vmem>>, vector<8x1xf32>
    %48 = vector.broadcast %47 : vector<8x1xf32> to vector<8x32xf32>
    %49 = arith.mulf %45, %48 : vector<8x32xf32>
    %50 = arith.index_cast %25 : i32 to index
    %c0_18 = arith.constant 0 : index
    %51 = vector.load %arg10[%50, %c0_18] : memref<64x32xf32, #tpu.memory_space<vmem>>, vector<8x32xf32>
    tpu.vector_store %arg10[%50, %c0_18], %49 {strides = array<i32>} : memref<64x32xf32, #tpu.memory_space<vmem>>, vector<8x32xf32>,
    %c1_i32 = arith.constant 1 : i32
    %c8_i32_19 = arith.constant 8 : i32
    %52 = arith.muli %c1_i32, %c8_i32_19 : i32
    %53 = tpu.assume_multiple %52, 8 : i32
    %54 = arith.index_cast %53 : i32 to index
    %c0_20 = arith.constant 0 : index
    %55 = vector.load %arg9[%54, %c0_20] : memref<64x128xf32, #tpu.memory_space<vmem>>, vector<8x128xf32>
    %cst_21 = arith.constant dense<0.000000e+00> : vector<8x128xf32>
    %56 = tpu.matmul %45, %12, %cst_21 {dimension_numbers = #tpu.dot_dimension_numbers<[1], [0], [0], [1], [0, 0, 1, 1], [], []>} : vector<8x32xf32>, vector<32x128xf32>, vector<8x128xf32> -> vector<8x128xf32>
    %57 = arith.addf %55, %56 : vector<8x128xf32>
    %58 = arith.mulf %57, %21 : vector<8x128xf32>
    %59 = math.tanh %58 : vector<8x128xf32>
    %cst_22 = arith.constant 5.000000e-01 : f32
    %60 = vector.broadcast %cst_22 : f32 to vector<8x128xf32>
    %61 = arith.mulf %60, %59 : vector<8x128xf32>
    %cst_23 = arith.constant 5.000000e-01 : f32
    %62 = vector.broadcast %cst_23 : f32 to vector<8x128xf32>
    %63 = arith.addf %61, %62 : vector<8x128xf32>
    %64 = arith.select %18, %59, %63 : vector<8x128xi1>, vector<8x128xf32>
    %65 = vector.extract_strided_slice %64 {offsets = [0, 0], sizes = [8, 32], strides = [1, 1]} : vector<8x128xf32> to vector<8x32xf32>
    %66 = vector.extract_strided_slice %64 {offsets = [0, 32], sizes = [8, 32], strides = [1, 1]} : vector<8x128xf32> to vector<8x32xf32>
    %67 = vector.extract_strided_slice %64 {offsets = [0, 64], sizes = [8, 32], strides = [1, 1]} : vector<8x128xf32> to vector<8x32xf32>
    %68 = vector.extract_strided_slice %64 {offsets = [0, 96], sizes = [8, 32], strides = [1, 1]} : vector<8x128xf32> to vector<8x32xf32>
    %69 = arith.mulf %66, %43 : vector<8x32xf32>
    %70 = arith.mulf %65, %67 : vector<8x32xf32>
    %71 = arith.addf %69, %70 : vector<8x32xf32>
    %72 = math.tanh %71 : vector<8x32xf32>
    %73 = arith.mulf %68, %72 : vector<8x32xf32>
    %74 = arith.index_cast %53 : i32 to index
    %c0_24 = arith.constant 0 : index
    %75 = vector.load %arg2[%74, %c0_24] : memref<64x1xf32, #tpu.memory_space<vmem>>, vector<8x1xf32>
    %76 = vector.broadcast %75 : vector<8x1xf32> to vector<8x32xf32>
    %77 = arith.mulf %73, %76 : vector<8x32xf32>
    %78 = arith.index_cast %53 : i32 to index
    %c0_25 = arith.constant 0 : index
    %79 = vector.load %arg10[%78, %c0_25] : memref<64x32xf32, #tpu.memory_space<vmem>>, vector<8x32xf32>
    tpu.vector_store %arg10[%78, %c0_25], %77 {strides = array<i32>} : memref<64x32xf32, #tpu.memory_space<vmem>>, vector<8x32xf32>,
    %c2_i32 = arith.constant 2 : i32
    %c8_i32_26 = arith.constant 8 : i32
    %80 = arith.muli %c2_i32, %c8_i32_26 : i32
    %81 = tpu.assume_multiple %80, 8 : i32
    %82 = arith.index_cast %81 : i32 to index
    %c0_27 = arith.constant 0 : index
    %83 = vector.load %arg9[%82, %c0_27] : memref<64x128xf32, #tpu.memory_space<vmem>>, vector<8x128xf32>
    %cst_28 = arith.constant dense<0.000000e+00> : vector<8x128xf32>
    %84 = tpu.matmul %73, %12, %cst_28 {dimension_numbers = #tpu.dot_dimension_numbers<[1], [0], [0], [1], [0, 0, 1, 1], [], []>} : vector<8x32xf32>, vector<32x128xf32>, vector<8x128xf32> -> vector<8x128xf32>
    %85 = arith.addf %83, %84 : vector<8x128xf32>
    %86 = arith.mulf %85, %21 : vector<8x128xf32>
    %87 = math.tanh %86 : vector<8x128xf32>
    %cst_29 = arith.constant 5.000000e-01 : f32
    %88 = vector.broadcast %cst_29 : f32 to vector<8x128xf32>
    %89 = arith.mulf %88, %87 : vector<8x128xf32>
    %cst_30 = arith.constant 5.000000e-01 : f32
    %90 = vector.broadcast %cst_30 : f32 to vector<8x128xf32>
    %91 = arith.addf %89, %90 : vector<8x128xf32>
    %92 = arith.select %18, %87, %91 : vector<8x128xi1>, vector<8x128xf32>
    %93 = vector.extract_strided_slice %92 {offsets = [0, 0], sizes = [8, 32], strides = [1, 1]} : vector<8x128xf32> to vector<8x32xf32>
    %94 = vector.extract_strided_slice %92 {offsets = [0, 32], sizes = [8, 32], strides = [1, 1]} : vector<8x128xf32> to vector<8x32xf32>
    %95 = vector.extract_strided_slice %92 {offsets = [0, 64], sizes = [8, 32], strides = [1, 1]} : vector<8x128xf32> to vector<8x32xf32>
    %96 = vector.extract_strided_slice %92 {offsets = [0, 96], sizes = [8, 32], strides = [1, 1]} : vector<8x128xf32> to vector<8x32xf32>
    %97 = arith.mulf %94, %71 : vector<8x32xf32>
    %98 = arith.mulf %93, %95 : vector<8x32xf32>
    %99 = arith.addf %97, %98 : vector<8x32xf32>
    %100 = math.tanh %99 : vector<8x32xf32>
    %101 = arith.mulf %96, %100 : vector<8x32xf32>
    %102 = arith.index_cast %81 : i32 to index
    %c0_31 = arith.constant 0 : index
    %103 = vector.load %arg2[%102, %c0_31] : memref<64x1xf32, #tpu.memory_space<vmem>>, vector<8x1xf32>
    %104 = vector.broadcast %103 : vector<8x1xf32> to vector<8x32xf32>
    %105 = arith.mulf %101, %104 : vector<8x32xf32>
    %106 = arith.index_cast %81 : i32 to index
    %c0_32 = arith.constant 0 : index
    %107 = vector.load %arg10[%106, %c0_32] : memref<64x32xf32, #tpu.memory_space<vmem>>, vector<8x32xf32>
    tpu.vector_store %arg10[%106, %c0_32], %105 {strides = array<i32>} : memref<64x32xf32, #tpu.memory_space<vmem>>, vector<8x32xf32>,
    %c3_i32 = arith.constant 3 : i32
    %c8_i32_33 = arith.constant 8 : i32
    %108 = arith.muli %c3_i32, %c8_i32_33 : i32
    %109 = tpu.assume_multiple %108, 8 : i32
    %110 = arith.index_cast %109 : i32 to index
    %c0_34 = arith.constant 0 : index
    %111 = vector.load %arg9[%110, %c0_34] : memref<64x128xf32, #tpu.memory_space<vmem>>, vector<8x128xf32>
    %cst_35 = arith.constant dense<0.000000e+00> : vector<8x128xf32>
    %112 = tpu.matmul %101, %12, %cst_35 {dimension_numbers = #tpu.dot_dimension_numbers<[1], [0], [0], [1], [0, 0, 1, 1], [], []>} : vector<8x32xf32>, vector<32x128xf32>, vector<8x128xf32> -> vector<8x128xf32>
    %113 = arith.addf %111, %112 : vector<8x128xf32>
    %114 = arith.mulf %113, %21 : vector<8x128xf32>
    %115 = math.tanh %114 : vector<8x128xf32>
    %cst_36 = arith.constant 5.000000e-01 : f32
    %116 = vector.broadcast %cst_36 : f32 to vector<8x128xf32>
    %117 = arith.mulf %116, %115 : vector<8x128xf32>
    %cst_37 = arith.constant 5.000000e-01 : f32
    %118 = vector.broadcast %cst_37 : f32 to vector<8x128xf32>
    %119 = arith.addf %117, %118 : vector<8x128xf32>
    %120 = arith.select %18, %115, %119 : vector<8x128xi1>, vector<8x128xf32>
    %121 = vector.extract_strided_slice %120 {offsets = [0, 0], sizes = [8, 32], strides = [1, 1]} : vector<8x128xf32> to vector<8x32xf32>
    %122 = vector.extract_strided_slice %120 {offsets = [0, 32], sizes = [8, 32], strides = [1, 1]} : vector<8x128xf32> to vector<8x32xf32>
    %123 = vector.extract_strided_slice %120 {offsets = [0, 64], sizes = [8, 32], strides = [1, 1]} : vector<8x128xf32> to vector<8x32xf32>
    %124 = vector.extract_strided_slice %120 {offsets = [0, 96], sizes = [8, 32], strides = [1, 1]} : vector<8x128xf32> to vector<8x32xf32>
    %125 = arith.mulf %122, %99 : vector<8x32xf32>
    %126 = arith.mulf %121, %123 : vector<8x32xf32>
    %127 = arith.addf %125, %126 : vector<8x32xf32>
    %128 = math.tanh %127 : vector<8x32xf32>
    %129 = arith.mulf %124, %128 : vector<8x32xf32>
    %130 = arith.index_cast %109 : i32 to index
    %c0_38 = arith.constant 0 : index
    %131 = vector.load %arg2[%130, %c0_38] : memref<64x1xf32, #tpu.memory_space<vmem>>, vector<8x1xf32>
    %132 = vector.broadcast %131 : vector<8x1xf32> to vector<8x32xf32>
    %133 = arith.mulf %129, %132 : vector<8x32xf32>
    %134 = arith.index_cast %109 : i32 to index
    %c0_39 = arith.constant 0 : index
    %135 = vector.load %arg10[%134, %c0_39] : memref<64x32xf32, #tpu.memory_space<vmem>>, vector<8x32xf32>
    tpu.vector_store %arg10[%134, %c0_39], %133 {strides = array<i32>} : memref<64x32xf32, #tpu.memory_space<vmem>>, vector<8x32xf32>,
    %c4_i32 = arith.constant 4 : i32
    %c8_i32_40 = arith.constant 8 : i32
    %136 = arith.muli %c4_i32, %c8_i32_40 : i32
    %137 = tpu.assume_multiple %136, 8 : i32
    %138 = arith.index_cast %137 : i32 to index
    %c0_41 = arith.constant 0 : index
    %139 = vector.load %arg9[%138, %c0_41] : memref<64x128xf32, #tpu.memory_space<vmem>>, vector<8x128xf32>
    %cst_42 = arith.constant dense<0.000000e+00> : vector<8x128xf32>
    %140 = tpu.matmul %129, %12, %cst_42 {dimension_numbers = #tpu.dot_dimension_numbers<[1], [0], [0], [1], [0, 0, 1, 1], [], []>} : vector<8x32xf32>, vector<32x128xf32>, vector<8x128xf32> -> vector<8x128xf32>
    %141 = arith.addf %139, %140 : vector<8x128xf32>
    %142 = arith.mulf %141, %21 : vector<8x128xf32>
    %143 = math.tanh %142 : vector<8x128xf32>
    %cst_43 = arith.constant 5.000000e-01 : f32
    %144 = vector.broadcast %cst_43 : f32 to vector<8x128xf32>
    %145 = arith.mulf %144, %143 : vector<8x128xf32>
    %cst_44 = arith.constant 5.000000e-01 : f32
    %146 = vector.broadcast %cst_44 : f32 to vector<8x128xf32>
    %147 = arith.addf %145, %146 : vector<8x128xf32>
    %148 = arith.select %18, %143, %147 : vector<8x128xi1>, vector<8x128xf32>
    %149 = vector.extract_strided_slice %148 {offsets = [0, 0], sizes = [8, 32], strides = [1, 1]} : vector<8x128xf32> to vector<8x32xf32>
    %150 = vector.extract_strided_slice %148 {offsets = [0, 32], sizes = [8, 32], strides = [1, 1]} : vector<8x128xf32> to vector<8x32xf32>
    %151 = vector.extract_strided_slice %148 {offsets = [0, 64], sizes = [8, 32], strides = [1, 1]} : vector<8x128xf32> to vector<8x32xf32>
    %152 = vector.extract_strided_slice %148 {offsets = [0, 96], sizes = [8, 32], strides = [1, 1]} : vector<8x128xf32> to vector<8x32xf32>
    %153 = arith.mulf %150, %127 : vector<8x32xf32>
    %154 = arith.mulf %149, %151 : vector<8x32xf32>
    %155 = arith.addf %153, %154 : vector<8x32xf32>
    %156 = math.tanh %155 : vector<8x32xf32>
    %157 = arith.mulf %152, %156 : vector<8x32xf32>
    %158 = arith.index_cast %137 : i32 to index
    %c0_45 = arith.constant 0 : index
    %159 = vector.load %arg2[%158, %c0_45] : memref<64x1xf32, #tpu.memory_space<vmem>>, vector<8x1xf32>
    %160 = vector.broadcast %159 : vector<8x1xf32> to vector<8x32xf32>
    %161 = arith.mulf %157, %160 : vector<8x32xf32>
    %162 = arith.index_cast %137 : i32 to index
    %c0_46 = arith.constant 0 : index
    %163 = vector.load %arg10[%162, %c0_46] : memref<64x32xf32, #tpu.memory_space<vmem>>, vector<8x32xf32>
    tpu.vector_store %arg10[%162, %c0_46], %161 {strides = array<i32>} : memref<64x32xf32, #tpu.memory_space<vmem>>, vector<8x32xf32>,
    %c5_i32 = arith.constant 5 : i32
    %c8_i32_47 = arith.constant 8 : i32
    %164 = arith.muli %c5_i32, %c8_i32_47 : i32
    %165 = tpu.assume_multiple %164, 8 : i32
    %166 = arith.index_cast %165 : i32 to index
    %c0_48 = arith.constant 0 : index
    %167 = vector.load %arg9[%166, %c0_48] : memref<64x128xf32, #tpu.memory_space<vmem>>, vector<8x128xf32>
    %cst_49 = arith.constant dense<0.000000e+00> : vector<8x128xf32>
    %168 = tpu.matmul %157, %12, %cst_49 {dimension_numbers = #tpu.dot_dimension_numbers<[1], [0], [0], [1], [0, 0, 1, 1], [], []>} : vector<8x32xf32>, vector<32x128xf32>, vector<8x128xf32> -> vector<8x128xf32>
    %169 = arith.addf %167, %168 : vector<8x128xf32>
    %170 = arith.mulf %169, %21 : vector<8x128xf32>
    %171 = math.tanh %170 : vector<8x128xf32>
    %cst_50 = arith.constant 5.000000e-01 : f32
    %172 = vector.broadcast %cst_50 : f32 to vector<8x128xf32>
    %173 = arith.mulf %172, %171 : vector<8x128xf32>
    %cst_51 = arith.constant 5.000000e-01 : f32
    %174 = vector.broadcast %cst_51 : f32 to vector<8x128xf32>
    %175 = arith.addf %173, %174 : vector<8x128xf32>
    %176 = arith.select %18, %171, %175 : vector<8x128xi1>, vector<8x128xf32>
    %177 = vector.extract_strided_slice %176 {offsets = [0, 0], sizes = [8, 32], strides = [1, 1]} : vector<8x128xf32> to vector<8x32xf32>
    %178 = vector.extract_strided_slice %176 {offsets = [0, 32], sizes = [8, 32], strides = [1, 1]} : vector<8x128xf32> to vector<8x32xf32>
    %179 = vector.extract_strided_slice %176 {offsets = [0, 64], sizes = [8, 32], strides = [1, 1]} : vector<8x128xf32> to vector<8x32xf32>
    %180 = vector.extract_strided_slice %176 {offsets = [0, 96], sizes = [8, 32], strides = [1, 1]} : vector<8x128xf32> to vector<8x32xf32>
    %181 = arith.mulf %178, %155 : vector<8x32xf32>
    %182 = arith.mulf %177, %179 : vector<8x32xf32>
    %183 = arith.addf %181, %182 : vector<8x32xf32>
    %184 = math.tanh %183 : vector<8x32xf32>
    %185 = arith.mulf %180, %184 : vector<8x32xf32>
    %186 = arith.index_cast %165 : i32 to index
    %c0_52 = arith.constant 0 : index
    %187 = vector.load %arg2[%186, %c0_52] : memref<64x1xf32, #tpu.memory_space<vmem>>, vector<8x1xf32>
    %188 = vector.broadcast %187 : vector<8x1xf32> to vector<8x32xf32>
    %189 = arith.mulf %185, %188 : vector<8x32xf32>
    %190 = arith.index_cast %165 : i32 to index
    %c0_53 = arith.constant 0 : index
    %191 = vector.load %arg10[%190, %c0_53] : memref<64x32xf32, #tpu.memory_space<vmem>>, vector<8x32xf32>
    tpu.vector_store %arg10[%190, %c0_53], %189 {strides = array<i32>} : memref<64x32xf32, #tpu.memory_space<vmem>>, vector<8x32xf32>,
    %c6_i32 = arith.constant 6 : i32
    %c8_i32_54 = arith.constant 8 : i32
    %192 = arith.muli %c6_i32, %c8_i32_54 : i32
    %193 = tpu.assume_multiple %192, 8 : i32
    %194 = arith.index_cast %193 : i32 to index
    %c0_55 = arith.constant 0 : index
    %195 = vector.load %arg9[%194, %c0_55] : memref<64x128xf32, #tpu.memory_space<vmem>>, vector<8x128xf32>
    %cst_56 = arith.constant dense<0.000000e+00> : vector<8x128xf32>
    %196 = tpu.matmul %185, %12, %cst_56 {dimension_numbers = #tpu.dot_dimension_numbers<[1], [0], [0], [1], [0, 0, 1, 1], [], []>} : vector<8x32xf32>, vector<32x128xf32>, vector<8x128xf32> -> vector<8x128xf32>
    %197 = arith.addf %195, %196 : vector<8x128xf32>
    %198 = arith.mulf %197, %21 : vector<8x128xf32>
    %199 = math.tanh %198 : vector<8x128xf32>
    %cst_57 = arith.constant 5.000000e-01 : f32
    %200 = vector.broadcast %cst_57 : f32 to vector<8x128xf32>
    %201 = arith.mulf %200, %199 : vector<8x128xf32>
    %cst_58 = arith.constant 5.000000e-01 : f32
    %202 = vector.broadcast %cst_58 : f32 to vector<8x128xf32>
    %203 = arith.addf %201, %202 : vector<8x128xf32>
    %204 = arith.select %18, %199, %203 : vector<8x128xi1>, vector<8x128xf32>
    %205 = vector.extract_strided_slice %204 {offsets = [0, 0], sizes = [8, 32], strides = [1, 1]} : vector<8x128xf32> to vector<8x32xf32>
    %206 = vector.extract_strided_slice %204 {offsets = [0, 32], sizes = [8, 32], strides = [1, 1]} : vector<8x128xf32> to vector<8x32xf32>
    %207 = vector.extract_strided_slice %204 {offsets = [0, 64], sizes = [8, 32], strides = [1, 1]} : vector<8x128xf32> to vector<8x32xf32>
    %208 = vector.extract_strided_slice %204 {offsets = [0, 96], sizes = [8, 32], strides = [1, 1]} : vector<8x128xf32> to vector<8x32xf32>
    %209 = arith.mulf %206, %183 : vector<8x32xf32>
    %210 = arith.mulf %205, %207 : vector<8x32xf32>
    %211 = arith.addf %209, %210 : vector<8x32xf32>
    %212 = math.tanh %211 : vector<8x32xf32>
    %213 = arith.mulf %208, %212 : vector<8x32xf32>
    %214 = arith.index_cast %193 : i32 to index
    %c0_59 = arith.constant 0 : index
    %215 = vector.load %arg2[%214, %c0_59] : memref<64x1xf32, #tpu.memory_space<vmem>>, vector<8x1xf32>
    %216 = vector.broadcast %215 : vector<8x1xf32> to vector<8x32xf32>
    %217 = arith.mulf %213, %216 : vector<8x32xf32>
    %218 = arith.index_cast %193 : i32 to index
    %c0_60 = arith.constant 0 : index
    %219 = vector.load %arg10[%218, %c0_60] : memref<64x32xf32, #tpu.memory_space<vmem>>, vector<8x32xf32>
    tpu.vector_store %arg10[%218, %c0_60], %217 {strides = array<i32>} : memref<64x32xf32, #tpu.memory_space<vmem>>, vector<8x32xf32>,
    %c7_i32 = arith.constant 7 : i32
    %c8_i32_61 = arith.constant 8 : i32
    %220 = arith.muli %c7_i32, %c8_i32_61 : i32
    %221 = tpu.assume_multiple %220, 8 : i32
    %222 = arith.index_cast %221 : i32 to index
    %c0_62 = arith.constant 0 : index
    %223 = vector.load %arg9[%222, %c0_62] : memref<64x128xf32, #tpu.memory_space<vmem>>, vector<8x128xf32>
    %cst_63 = arith.constant dense<0.000000e+00> : vector<8x128xf32>
    %224 = tpu.matmul %213, %12, %cst_63 {dimension_numbers = #tpu.dot_dimension_numbers<[1], [0], [0], [1], [0, 0, 1, 1], [], []>} : vector<8x32xf32>, vector<32x128xf32>, vector<8x128xf32> -> vector<8x128xf32>
    %225 = arith.addf %223, %224 : vector<8x128xf32>
    %226 = arith.mulf %225, %21 : vector<8x128xf32>
    %227 = math.tanh %226 : vector<8x128xf32>
    %cst_64 = arith.constant 5.000000e-01 : f32
    %228 = vector.broadcast %cst_64 : f32 to vector<8x128xf32>
    %229 = arith.mulf %228, %227 : vector<8x128xf32>
    %cst_65 = arith.constant 5.000000e-01 : f32
    %230 = vector.broadcast %cst_65 : f32 to vector<8x128xf32>
    %231 = arith.addf %229, %230 : vector<8x128xf32>
    %232 = arith.select %18, %227, %231 : vector<8x128xi1>, vector<8x128xf32>
    %233 = vector.extract_strided_slice %232 {offsets = [0, 0], sizes = [8, 32], strides = [1, 1]} : vector<8x128xf32> to vector<8x32xf32>
    %234 = vector.extract_strided_slice %232 {offsets = [0, 32], sizes = [8, 32], strides = [1, 1]} : vector<8x128xf32> to vector<8x32xf32>
    %235 = vector.extract_strided_slice %232 {offsets = [0, 64], sizes = [8, 32], strides = [1, 1]} : vector<8x128xf32> to vector<8x32xf32>
    %236 = vector.extract_strided_slice %232 {offsets = [0, 96], sizes = [8, 32], strides = [1, 1]} : vector<8x128xf32> to vector<8x32xf32>
    %237 = arith.mulf %234, %211 : vector<8x32xf32>
    %238 = arith.mulf %233, %235 : vector<8x32xf32>
    %239 = arith.addf %237, %238 : vector<8x32xf32>
    %240 = math.tanh %239 : vector<8x32xf32>
    %241 = arith.mulf %236, %240 : vector<8x32xf32>
    %242 = arith.index_cast %221 : i32 to index
    %c0_66 = arith.constant 0 : index
    %243 = vector.load %arg2[%242, %c0_66] : memref<64x1xf32, #tpu.memory_space<vmem>>, vector<8x1xf32>
    %244 = vector.broadcast %243 : vector<8x1xf32> to vector<8x32xf32>
    %245 = arith.mulf %241, %244 : vector<8x32xf32>
    %246 = arith.index_cast %221 : i32 to index
    %c0_67 = arith.constant 0 : index
    %247 = vector.load %arg10[%246, %c0_67] : memref<64x32xf32, #tpu.memory_space<vmem>>, vector<8x32xf32>
    tpu.vector_store %arg10[%246, %c0_67], %245 {strides = array<i32>} : memref<64x32xf32, #tpu.memory_space<vmem>>, vector<8x32xf32>,
    %c8_i32_68 = arith.constant 8 : i32
    %c0_69 = arith.constant 0 : index
    %c0_70 = arith.constant 0 : index
    %248 = vector.load %arg10[%c0_69, %c0_70] : memref<64x32xf32, #tpu.memory_space<vmem>>, vector<64x32xf32>
    %c0_71 = arith.constant 0 : index
    %c0_72 = arith.constant 0 : index
    %249 = vector.load %arg6[%c0_71, %c0_72] : memref<32x128xf32, #tpu.memory_space<vmem>>, vector<32x128xf32>
    %cst_73 = arith.constant dense<0.000000e+00> : vector<64x128xf32>
    %250 = tpu.matmul %248, %249, %cst_73 {dimension_numbers = #tpu.dot_dimension_numbers<[1], [0], [0], [1], [0, 0, 1, 1], [], []>} : vector<64x32xf32>, vector<32x128xf32>, vector<64x128xf32> -> vector<64x128xf32>
    %c0_74 = arith.constant 0 : index
    %c0_75 = arith.constant 0 : index
    %251 = vector.load %arg7[%c0_74, %c0_75] : memref<1x128xf32, #tpu.memory_space<vmem>>, vector<1x128xf32>
    %252 = vector.broadcast %251 : vector<1x128xf32> to vector<64x128xf32>
    %253 = arith.addf %250, %252 : vector<64x128xf32>
    %cst_76 = arith.constant dense<0xFF800000> : vector<64xf32>
    %254 = vector.multi_reduction <maximumf>, %253, %cst_76 [1] : vector<64x128xf32> to vector<64xf32>
    %255 = vector.shape_cast %254 : vector<64xf32> to vector<64x1xf32>
    %256 = vector.broadcast %255 : vector<64x1xf32> to vector<64x128xf32>
    %257 = arith.subf %253, %256 : vector<64x128xf32>
    %258 = math.exp %257 : vector<64x128xf32>
    %cst_77 = arith.constant dense<0.000000e+00> : vector<64xf32>
    %259 = vector.multi_reduction <add>, %258, %cst_77 [1] : vector<64x128xf32> to vector<64xf32>
    %260 = vector.shape_cast %259 : vector<64xf32> to vector<64x1xf32>
    %261 = math.log %260 : vector<64x1xf32>
    %262 = vector.broadcast %261 : vector<64x1xf32> to vector<64x128xf32>
    %263 = arith.subf %257, %262 : vector<64x128xf32>
    %c0_78 = arith.constant 0 : index
    %c0_79 = arith.constant 0 : index
    %264 = vector.load %arg8[%c0_78, %c0_79] : memref<64x128xf32, #tpu.memory_space<vmem>>, vector<64x128xf32>
    tpu.vector_store %arg8[%c0_78, %c0_79], %263 {strides = array<i32>} : memref<64x128xf32, #tpu.memory_space<vmem>>, vector<64x128xf32>,
    return
  }
  func.func @transform_0(%arg0: i32) -> (i32, i32) {
    %c0_i32 = arith.constant 0 : i32
    %c0_i32_0 = arith.constant 0 : i32
    %c0_i32_1 = arith.constant 0 : i32
    return %c0_i32, %c0_i32_0 : i32, i32
  }
  func.func @transform_1(%arg0: i32) -> (i32, i32) {
    %c0_i32 = arith.constant 0 : i32
    %c0_i32_0 = arith.constant 0 : i32
    %c0_i32_1 = arith.constant 0 : i32
    return %c0_i32, %c0_i32_0 : i32, i32
  }
  func.func @transform_2(%arg0: i32) -> (i32, i32) {
    %c0_i32 = arith.constant 0 : i32
    %c0_i32_0 = arith.constant 0 : i32
    %c0_i32_1 = arith.constant 0 : i32
    return %c0_i32, %c0_i32_0 : i32, i32
  }
  func.func @transform_3(%arg0: i32) -> (i32, i32) {
    %c0_i32 = arith.constant 0 : i32
    %c0_i32_0 = arith.constant 0 : i32
    %c0_i32_1 = arith.constant 0 : i32
    return %c0_i32, %c0_i32_0 : i32, i32
  }
  func.func @transform_4(%arg0: i32) -> (i32, i32) {
    %c0_i32 = arith.constant 0 : i32
    %c0_i32_0 = arith.constant 0 : i32
    %c0_i32_1 = arith.constant 0 : i32
    return %c0_i32, %c0_i32_0 : i32, i32
  }
  func.func @transform_5(%arg0: i32) -> (i32, i32) {
    %c0_i32 = arith.constant 0 : i32
    %c0_i32_0 = arith.constant 0 : i32
    %c0_i32_1 = arith.constant 0 : i32
    return %c0_i32, %c0_i32_0 : i32, i32
  }
  func.func @transform_6(%arg0: i32) -> (i32, i32) {
    %c0_i32 = arith.constant 0 : i32
    %c0_i32_0 = arith.constant 0 : i32
    %c0_i32_1 = arith.constant 0 : i32
    return %c0_i32, %c0_i32_0 : i32, i32
  }
  func.func @transform_7(%arg0: i32) -> (i32, i32) {
    %c0_i32 = arith.constant 0 : i32
    %c0_i32_0 = arith.constant 0 : i32
    %c0_i32_1 = arith.constant 0 : i32
    return %c0_i32, %c0_i32_0 : i32, i32
  }
}

</mosaic_0001>

<llo_original>
// kernel: tpu_custom_call.1
$region0: #{tpu_custom_call.1}
  #allocation0 [shape = 'u32[]', space=smem, size = 0x4, offset = 0x4, fixed_abs, tag = 'smem constant byte address 0x4 - core index']
  #allocation1 [shape = 'u32[144,128]{1,0:T(1,128)}', space=vmem, size = 0x12000, scoped, tag = 'internal scratch']
  #allocation2 [shape = 'f32[64,128]{1,0:T(8,128)}', space=vmem, size = 0x8000, scoped, tag = 'scratch operand']
  #allocation3 [shape = 'f32[64,32]{1,0:T(8,128)}', space=vmem, size = 0x8000, scoped, tag = 'scratch operand']
  %s0 = inlined_call_operand.vmem [shape: s32[64,1], index: 0, kind: input, shape index: {}]
  %s1 = inlined_call_operand.vmem [shape: f32[64,1], index: 1, kind: input, shape index: {}]
  %s2 = inlined_call_operand.vmem [shape: f32[128,128], index: 2, kind: input, shape index: {}]
  %s3 = inlined_call_operand.vmem [shape: f32[1,128], index: 3, kind: input, shape index: {}]
  %s4 = inlined_call_operand.hbm [shape: f32[32,128], index: 4, kind: input, shape index: {}]
  %s5 = inlined_call_operand.hbm [shape: f32[32,128], index: 5, kind: input, shape index: {}]
  %s6 = inlined_call_operand.vmem [shape: f32[1,128], index: 6, kind: input, shape index: {}]
  %s7 = inlined_call_operand.hbm [shape: f32[64,128], index: 7, kind: output, shape index: {}]
  %s8 = sld [smem:[#allocation0]]
  $region46: #{tpu_custom_call.1} parent=0
    _
  %s10 = ssub.s32 1, %s8
  %s11 = scalar_select 0, %s10, %s8
  $region1: #{tpu_custom_call.1} parent=0
    #allocation4 [shape = 'u8[16384]{0}', space=vmem, size = 0x4000, scoped, tag = 'input window, operand 4, single buffered']
    #allocation5 [shape = 's32[1]{0}', space=sflag, size = 0x4, scoped, tag = 'scoped memory for tpu_custom_call.1']
    #allocation6 [shape = 's32[1]{0}', space=sflag, size = 0x4, scoped, tag = 'scoped memory for tpu_custom_call.1']
    #allocation7 [shape = 'u8[16384]{0}', space=vmem, size = 0x4000, scoped, tag = 'input window, operand 5, single buffered']
    #allocation8 [shape = 's32[1]{0}', space=sflag, size = 0x4, scoped, tag = 'scoped memory for tpu_custom_call.1']
    #allocation9 [shape = 'u8[32768]{0}', space=vmem, size = 0x8000, scoped, tag = 'output window, operand 0, single buffered']
    %12 = vsyncpa [#allocation5], 0
    %13 = vsyncpa [#allocation8], 0
    %14 = vsyncpa [#allocation6], 0
    // Predicated region
    $region2: #{tpu_custom_call.1} parent=1 // pred_check
      _
    $region3: #{tpu_custom_call.1} parent=1 // pred_check_branch
      %16 = sbr.rel (0) target = $region5
    $region4: #{tpu_custom_call.1} parent=1 // pred_region
      _
    $region5: #{tpu_custom_call.1} parent=1 // pred_fallthru
      _
    // Predicated region
    $region6: #{tpu_custom_call.1} parent=1 // pred_check
      _
    $region7: #{tpu_custom_call.1} parent=1 // pred_check_branch
      %18 = sbr.rel (0) target = $region9
    $region8: #{tpu_custom_call.1} parent=1 // pred_region
      _
    $region9: #{tpu_custom_call.1} parent=1 // pred_fallthru
      _
    // Predicated region
    $region10: #{tpu_custom_call.1} parent=1 // pred_check
      _
    $region11: #{tpu_custom_call.1} parent=1 // pred_check_branch
      %20 = sbr.rel (0) target = $region13
    $region12: #{tpu_custom_call.1} parent=1 // pred_region
      _
    $region13: #{tpu_custom_call.1} parent=1 // pred_fallthru
      _
    // Predicated region
    $region14: #{tpu_custom_call.1} parent=1 // pred_check
      _
    $region15: #{tpu_custom_call.1} parent=1 // pred_check_branch
      %22 = sbr.rel (0) target = $region17
    $region16: #{tpu_custom_call.1} parent=1 // pred_region
      _
    $region17: #{tpu_custom_call.1} parent=1 // pred_fallthru
      _
    // Predicated region
    $region18: #{tpu_custom_call.1} parent=1 // pred_check
      _
    $region19: #{tpu_custom_call.1} parent=1 // pred_check_branch
      %24 = sbr.rel (0) target = $region21
    $region20: #{tpu_custom_call.1} parent=1 // pred_region
      %s26 = ssub.s32 512, 512
      %27 = vsyncadd [#allocation5], %s26
      %s28 = sshll.u32 [#allocation4], 4
      %s29 = int_to_ptr.vmem [resolvable:$true] %s28
      %34 = dma.hbm_to_vmem [thread:$0]  %s4, 512, %s29, [#allocation5], 128, 128, 8
    $region21: #{tpu_custom_call.1} parent=1 // pred_fallthru
      _
    // Predicated region
    $region22: #{tpu_custom_call.1} parent=1 // pred_check
      _
    $region23: #{tpu_custom_call.1} parent=1 // pred_check_branch
      %36 = sbr.rel (0) target = $region25
    $region24: #{tpu_custom_call.1} parent=1 // pred_region
      %s38 = ssub.s32 512, 512
      %39 = vsyncadd [#allocation8], %s38
      %s40 = sshll.u32 [#allocation7], 4
      %s41 = int_to_ptr.vmem [resolvable:$true] %s40
      %46 = dma.hbm_to_vmem [thread:$0]  %s5, 512, %s41, [#allocation8], 128, 128, 8
    $region25: #{tpu_custom_call.1} parent=1 // pred_fallthru
      _
    // Predicated region
    $region26: #{tpu_custom_call.1} parent=1 // pred_check
      _
    $region27: #{tpu_custom_call.1} parent=1 // pred_check_branch
      %48 = sbr.rel (0) target = $region29
    $region28: #{tpu_custom_call.1} parent=1 // pred_region
      _
    $region29: #{tpu_custom_call.1} parent=1 // pred_fallthru
      _
    // Predicated region
    $region30: #{tpu_custom_call.1} parent=1 // pred_check
      _
    $region31: #{tpu_custom_call.1} parent=1 // pred_check_branch
      %50 = sbr.rel (0) target = $region33
    $region32: #{tpu_custom_call.1} parent=1 // pred_region
      %51 = dma.done [#allocation5], 512
    $region33: #{tpu_custom_call.1} parent=1 // pred_fallthru
      _
    // Predicated region
    $region34: #{tpu_custom_call.1} parent=1 // pred_check
      _
    $region35: #{tpu_custom_call.1} parent=1 // pred_check_branch
      %53 = sbr.rel (0) target = $region37
    $region36: #{tpu_custom_call.1} parent=1 // pred_region
      %54 = dma.done [#allocation8], 512
    $region37: #{tpu_custom_call.1} parent=1 // pred_fallthru
      _
    %v55 = vlaneseq
    %v56 = vand.u32 %v55, 127
    %v57 = vld [vmem:[%s0] sm:$0xff]
    %v58 = vld [vmem:[%s0 + $0x8] sm:$0xff]
    %v59 = vld [vmem:[%s0 + $0x10] sm:$0xff]
    %v60 = vld [vmem:[%s0 + $0x18] sm:$0xff]
    %v61 = vld [vmem:[%s0 + $0x20] sm:$0xff]
    %v62 = vld [vmem:[%s0 + $0x28] sm:$0xff]
    %v63 = vld [vmem:[%s0 + $0x30] sm:$0xff]
    %v64 = vld [vmem:[%s0 + $0x38] sm:$0xff]
    %65 = vset.pattern.permute.xlu0 0
    %66 = vperm.xlu0 %65, %v57
    %v67 = vpop.permute.xlu0 %66
    %68 = vset.pattern.permute.xlu0 0
    %69 = vperm.xlu0 %68, %v58
    %v70 = vpop.permute.xlu0 %69
    %71 = vset.pattern.permute.xlu0 0
    %72 = vperm.xlu0 %71, %v59
    %v73 = vpop.permute.xlu0 %72
    %74 = vset.pattern.permute.xlu0 0
    %75 = vperm.xlu0 %74, %v60
    %v76 = vpop.permute.xlu0 %75
    %77 = vset.pattern.permute.xlu0 0
    %78 = vperm.xlu0 %77, %v61
    %v79 = vpop.permute.xlu0 %78
    %80 = vset.pattern.permute.xlu0 0
    %81 = vperm.xlu0 %80, %v62
    %v82 = vpop.permute.xlu0 %81
    %83 = vset.pattern.permute.xlu0 0
    %84 = vperm.xlu0 %83, %v63
    %v85 = vpop.permute.xlu0 %84
    %86 = vset.pattern.permute.xlu0 0
    %87 = vperm.xlu0 %86, %v64
    %v88 = vpop.permute.xlu0 %87
    %vm89 = vcmp.eq.s32.totalorder %v56, %v67
    %vm90 = vcmp.eq.s32.totalorder %v56, %v70
    %vm91 = vcmp.eq.s32.totalorder %v56, %v73
    %vm92 = vcmp.eq.s32.totalorder %v56, %v76
    %vm93 = vcmp.eq.s32.totalorder %v56, %v79
    %vm94 = vcmp.eq.s32.totalorder %v56, %v82
    %vm95 = vcmp.eq.s32.totalorder %v56, %v85
    %vm96 = vcmp.eq.s32.totalorder %v56, %v88
    %v97 = vsel %vm89, 1, 0
    %v98 = vsel %vm90, 1, 0
    %v99 = vsel %vm91, 1, 0
    %v100 = vsel %vm92, 1, 0
    %v101 = vsel %vm93, 1, 0
    %v102 = vsel %vm94, 1, 0
    %v103 = vsel %vm95, 1, 0
    %v104 = vsel %vm96, 1, 0
    %v105 = vcvt.s32.f32 %v97
    %v106 = vcvt.s32.f32 %v98
    %v107 = vcvt.s32.f32 %v99
    %v108 = vcvt.s32.f32 %v100
    %v109 = vcvt.s32.f32 %v101
    %v110 = vcvt.s32.f32 %v102
    %v111 = vcvt.s32.f32 %v103
    %v112 = vcvt.s32.f32 %v104
    %v113 = vld [vmem:[%s2] sm:$0xff]
    %v114 = vld [vmem:[%s2 + $0x8] sm:$0xff]
    %v115 = vld [vmem:[%s2 + $0x10] sm:$0xff]
    %v116 = vld [vmem:[%s2 + $0x18] sm:$0xff]
    %v117 = vld [vmem:[%s2 + $0x20] sm:$0xff]
    %v118 = vld [vmem:[%s2 + $0x28] sm:$0xff]
    %v119 = vld [vmem:[%s2 + $0x30] sm:$0xff]
    %v120 = vld [vmem:[%s2 + $0x38] sm:$0xff]
    %v121 = vld [vmem:[%s2 + $0x40] sm:$0xff]
    %v122 = vld [vmem:[%s2 + $0x48] sm:$0xff]
    %v123 = vld [vmem:[%s2 + $0x50] sm:$0xff]
    %v124 = vld [vmem:[%s2 + $0x58] sm:$0xff]
    %v125 = vld [vmem:[%s2 + $0x60] sm:$0xff]
    %v126 = vld [vmem:[%s2 + $0x68] sm:$0xff]
    %v127 = vld [vmem:[%s2 + $0x70] sm:$0xff]
    %v128 = vld [vmem:[%s2 + $0x78] sm:$0xff]
    %v129 = vld [vmem:[%s3] sm:$0x1]
    %v131 = vlaneseq
    %v132 = vshrl.u32 %v131, 7
    %v133 = vsub.s32 0, %v132
    %v134 = vrot.slane %v129, %v133
    %136 = vmatprep.subr.mxu0 0.0
    %137 = vmatpush1.msra.mxu0 %v113
    %138 = vmatprep.subr.mxu0 0.0
    %139 = vmatpush1.msra.mxu0 %v114
    %140 = vmatprep.subr.mxu0 0.0
    %141 = vmatpush1.msra.mxu0 %v115
    %142 = vmatprep.subr.mxu0 0.0
    %143 = vmatpush1.msra.mxu0 %v116
    %144 = vmatprep.subr.mxu0 0.0
    %145 = vmatpush1.msra.mxu0 %v117
    %146 = vmatprep.subr.mxu0 0.0
    %147 = vmatpush1.msra.mxu0 %v118
    %148 = vmatprep.subr.mxu0 0.0
    %149 = vmatpush1.msra.mxu0 %v119
    %150 = vmatprep.subr.mxu0 0.0
    %151 = vmatpush1.msra.mxu0 %v120
    %152 = vmatprep.subr.mxu0 0.0
    %153 = vmatpush1.msra.mxu0 %v121
    %154 = vmatprep.subr.mxu0 0.0
    %155 = vmatpush1.msra.mxu0 %v122
    %156 = vmatprep.subr.mxu0 0.0
    %157 = vmatpush1.msra.mxu0 %v123
    %158 = vmatprep.subr.mxu0 0.0
    %159 = vmatpush1.msra.mxu0 %v124
    %160 = vmatprep.subr.mxu0 0.0
    %161 = vmatpush1.msra.mxu0 %v125
    %162 = vmatprep.subr.mxu0 0.0
    %163 = vmatpush1.msra.mxu0 %v126
    %164 = vmatprep.subr.mxu0 0.0
    %165 = vmatpush1.msra.mxu0 %v127
    %166 = vmatprep.subr.mxu0 0.0
    %167 = vmatpush1.msra.mxu0 %v128
    %168 = vmatprep.subr.mxu0 0.0
    %169 = vmatpush1.msra.mxu0 0.0
    %170 = vmatprep.subr.mxu0 0.0
    %171 = vmatpush1.msra.mxu0 0.0
    %172 = vmatprep.subr.mxu0 0.0
    %173 = vmatpush1.msra.mxu0 0.0
    %174 = vmatprep.subr.mxu0 0.0
    %175 = vmatpush1.msra.mxu0 0.0
    %176 = vmatprep.subr.mxu0 0.0
    %177 = vmatpush1.msra.mxu0 0.0
    %178 = vmatprep.subr.mxu0 0.0
    %179 = vmatpush1.msra.mxu0 0.0
    %180 = vmatprep.subr.mxu0 0.0
    %181 = vmatpush1.msra.mxu0 0.0
    %182 = vmatprep.subr.mxu0 0.0
    %183 = vmatpush1.msra.mxu0 0.0
    %184 = vmatprep.subr.mxu0 0.0
    %185 = vmatpush1.msra.mxu0 0.0
    %186 = vmatprep.subr.mxu0 0.0
    %187 = vmatpush1.msra.mxu0 0.0
    %188 = vmatprep.subr.mxu0 0.0
    %189 = vmatpush1.msra.mxu0 0.0
    %190 = vmatprep.subr.mxu0 0.0
    %191 = vmatpush1.msra.mxu0 0.0
    %192 = vmatprep.subr.mxu0 0.0
    %193 = vmatpush1.msra.mxu0 0.0
    %194 = vmatprep.subr.mxu0 0.0
    %195 = vmatpush1.msra.mxu0 0.0
    %196 = vmatprep.subr.mxu0 0.0
    %197 = vmatpush1.msra.mxu0 0.0
    %198 = vmatprep.subr.mxu0 0.0
    %199 = vmatpush1.msra.mxu0 0.0
    %200 = vmatprep.mubr.f32.mxu0 0.0
    %201 = vmatmul.mubr.f32.gmra.mrb[0].mxu0 %v105
    %v202 = vpop.f32.mrb[0].mxu0
    %v203 = vadd.f32 %v134, %v202
    %v204 = vpop.f32.mrb[0].mxu0
    %205 = vmatprep.mubr.f32.mxu0 0.0
    %206 = vmatmul.mubr.f32.gmra.mrb[0].mxu0 %v106
    %v207 = vpop.f32.mrb[0].mxu0
    %v208 = vadd.f32 %v134, %v207
    %v209 = vpop.f32.mrb[0].mxu0
    %210 = vmatprep.mubr.f32.mxu0 0.0
    %211 = vmatmul.mubr.f32.gmra.mrb[0].mxu0 %v107
    %v212 = vpop.f32.mrb[0].mxu0
    %v213 = vadd.f32 %v134, %v212
    %v214 = vpop.f32.mrb[0].mxu0
    %215 = vmatprep.mubr.f32.mxu0 0.0
    %216 = vmatmul.mubr.f32.gmra.mrb[0].mxu0 %v108
    %v217 = vpop.f32.mrb[0].mxu0
    %v218 = vadd.f32 %v134, %v217
    %v219 = vpop.f32.mrb[0].mxu0
    %220 = vmatprep.mubr.f32.mxu0 0.0
    %221 = vmatmul.mubr.f32.gmra.mrb[0].mxu0 %v109
    %v222 = vpop.f32.mrb[0].mxu0
    %v223 = vadd.f32 %v134, %v222
    %v224 = vpop.f32.mrb[0].mxu0
    %225 = vmatprep.mubr.f32.mxu0 0.0
    %226 = vmatmul.mubr.f32.gmra.mrb[0].mxu0 %v110
    %v227 = vpop.f32.mrb[0].mxu0
    %v228 = vadd.f32 %v134, %v227
    %v229 = vpop.f32.mrb[0].mxu0
    %230 = vmatprep.mubr.f32.mxu0 0.0
    %231 = vmatmul.mubr.f32.gmra.mrb[0].mxu0 %v111
    %v232 = vpop.f32.mrb[0].mxu0
    %v233 = vadd.f32 %v134, %v232
    %v234 = vpop.f32.mrb[0].mxu0
    %235 = vmatprep.mubr.f32.mxu0 0.0
    %236 = vmatmul.mubr.f32.gmra.mrb[0].mxu0 %v112
    %v237 = vpop.f32.mrb[0].mxu0
    %v238 = vadd.f32 %v134, %v237
    %v239 = vpop.f32.mrb[0].mxu0
    %240 = vdwg.mxu0
    %241 = vst [vmem:[#allocation2] sm:$0xff] %v203
    %242 = vst [vmem:[#allocation2 + $0x8] sm:$0xff] %v208
    %243 = vst [vmem:[#allocation2 + $0x10] sm:$0xff] %v213
    %244 = vst [vmem:[#allocation2 + $0x18] sm:$0xff] %v218
    %245 = vst [vmem:[#allocation2 + $0x20] sm:$0xff] %v223
    %246 = vst [vmem:[#allocation2 + $0x28] sm:$0xff] %v228
    %247 = vst [vmem:[#allocation2 + $0x30] sm:$0xff] %v233
    %248 = vst [vmem:[#allocation2 + $0x38] sm:$0xff] %v238
    %v249 = vld [vmem:[#allocation4] sm:$0xff]
    %v250 = vld [vmem:[#allocation4 + $0x8] sm:$0xff]
    %v251 = vld [vmem:[#allocation4 + $0x10] sm:$0xff]
    %v252 = vld [vmem:[#allocation4 + $0x18] sm:$0xff]
    %vm253 = vcmp.ge.s32.totalorder %v56, 64
    %vm254 = vcmp.lt.s32.totalorder %v56, 96
    %vm255 = vmand %vm253, %vm254
    %v256 = vsel %vm255, 1.0, 0.5
    %v257 = vld [vmem:[#allocation2] sm:$0xff]
    %vm258 = vcmask 261120
    %v260 = vsel %vm258, 0.0, 0
    %262 = vmatprep.subr.mxu0 0.0
    %263 = vmatpush1.msra.mxu0 %v249
    %264 = vmatprep.subr.mxu0 0.0
    %265 = vmatpush1.msra.mxu0 %v250
    %266 = vmatprep.subr.mxu0 0.0
    %267 = vmatpush1.msra.mxu0 %v251
    %268 = vmatprep.subr.mxu0 0.0
    %269 = vmatpush1.msra.mxu0 %v252
    %270 = vmatprep.subr.mxu0 0.0
    %271 = vmatpush1.msra.mxu0 0.0
    %272 = vmatprep.subr.mxu0 0.0
    %273 = vmatpush1.msra.mxu0 0.0
    %274 = vmatprep.subr.mxu0 0.0
    %275 = vmatpush1.msra.mxu0 0.0
    %276 = vmatprep.subr.mxu0 0.0
    %277 = vmatpush1.msra.mxu0 0.0
    %278 = vmatprep.subr.mxu0 0.0
    %279 = vmatpush1.msra.mxu0 0.0
    %280 = vmatprep.subr.mxu0 0.0
    %281 = vmatpush1.msra.mxu0 0.0
    %282 = vmatprep.subr.mxu0 0.0
    %283 = vmatpush1.msra.mxu0 0.0
    %284 = vmatprep.subr.mxu0 0.0
    %285 = vmatpush1.msra.mxu0 0.0
    %286 = vmatprep.subr.mxu0 0.0
    %287 = vmatpush1.msra.mxu0 0.0
    %288 = vmatprep.subr.mxu0 0.0
    %289 = vmatpush1.msra.mxu0 0.0
    %290 = vmatprep.subr.mxu0 0.0
    %291 = vmatpush1.msra.mxu0 0.0
    %292 = vmatprep.subr.mxu0 0.0
    %293 = vmatpush1.msra.mxu0 0.0
    %294 = vmatprep.subr.mxu0 0.0
    %295 = vmatpush1.msra.mxu0 0.0
    %296 = vmatprep.subr.mxu0 0.0
    %297 = vmatpush1.msra.mxu0 0.0
    %298 = vmatprep.subr.mxu0 0.0
    %299 = vmatpush1.msra.mxu0 0.0
    %300 = vmatprep.subr.mxu0 0.0
    %301 = vmatpush1.msra.mxu0 0.0
    %302 = vmatprep.subr.mxu0 0.0
    %303 = vmatpush1.msra.mxu0 0.0
    %304 = vmatprep.subr.mxu0 0.0
    %305 = vmatpush1.msra.mxu0 0.0
    %306 = vmatprep.subr.mxu0 0.0
    %307 = vmatpush1.msra.mxu0 0.0
    %308 = vmatprep.subr.mxu0 0.0
    %309 = vmatpush1.msra.mxu0 0.0
    %310 = vmatprep.subr.mxu0 0.0
    %311 = vmatpush1.msra.mxu0 0.0
    %312 = vmatprep.subr.mxu0 0.0
    %313 = vmatpush1.msra.mxu0 0.0
    %314 = vmatprep.subr.mxu0 0.0
    %315 = vmatpush1.msra.mxu0 0.0
    %316 = vmatprep.subr.mxu0 0.0
    %317 = vmatpush1.msra.mxu0 0.0
    %318 = vmatprep.subr.mxu0 0.0
    %319 = vmatpush1.msra.mxu0 0.0
    %320 = vmatprep.subr.mxu0 0.0
    %321 = vmatpush1.msra.mxu0 0.0
    %322 = vmatprep.subr.mxu0 0.0
    %323 = vmatpush1.msra.mxu0 0.0
    %324 = vmatprep.subr.mxu0 0.0
    %325 = vmatpush1.msra.mxu0 0.0
    %326 = vmatprep.mubr.f32.mxu0 0.0
    %327 = vmatmul.mubr.f32.gmra.mrb[0].mxu0 %v260
    %v328 = vpop.f32.mrb[0].mxu0
    %v329 = vadd.f32 0.0, %v328
    %v330 = vpop.f32.mrb[0].mxu0
    %331 = vdwg.mxu0
    %v332 = vadd.f32 %v257, %v329
    %v333 = vmul.f32 %v332, %v256
    %v334 = vtanh.pop %v333
    %v335 = vmul.f32 %v334, 0.5
    %v336 = vadd.f32 %v335, 0.5
    %v337 = vsel %vm255, %v334, %v336
    %v338 = vmul.f32 %v337, 0.0
    %340 = vrot.lane.b32.xlu0 %v337, 64
    %v341 = vpop.permute.xlu0 %340
    %v343 = vmul.f32 %v337, %v341
    %345 = vrot.lane.b32.xlu0 %v343, 32
    %v346 = vpop.permute.xlu0 %345
    %v348 = vadd.f32 %v338, %v346
    %v349 = vtanh.pop %v348
    %351 = vrot.lane.b32.xlu0 %v349, 64
    %v352 = vpop.permute.xlu0 %351
    %v354 = vmul.f32 %v337, %v352
    %v355 = vld [vmem:[%s1] sm:$0xff]
    %357 = vset.pattern.permute.xlu0 0
    %358 = vperm.xlu0 %357, %v355
    %v359 = vpop.permute.xlu0 %358
    %v361 = vmul.f32 %v354, %v359
    %363 = vrot.lane.b32.xlu0 %v361, 32
    %v364 = vpop.permute.xlu0 %363
    %366 = vst.msk [vmem:[#allocation3] sm:$0xff] %vm258, %v364
    %s367 = scalar_lea.vmem [#allocation2], 8
    %v368 = vld [vmem:[%s367] sm:$0xff]
    %370 = vrot.lane.b32.xlu0 %v354, 32
    %v371 = vpop.permute.xlu0 %370
    %v372 = vsel %vm258, %v371, 0
    %374 = vmatprep.subr.mxu0 0.0
    %375 = vmatpush1.msra.mxu0 %v249
    %376 = vmatprep.subr.mxu0 0.0
    %377 = vmatpush1.msra.mxu0 %v250
    %378 = vmatprep.subr.mxu0 0.0
    %379 = vmatpush1.msra.mxu0 %v251
    %380 = vmatprep.subr.mxu0 0.0
    %381 = vmatpush1.msra.mxu0 %v252
    %382 = vmatprep.subr.mxu0 0.0
    %383 = vmatpush1.msra.mxu0 0.0
    %384 = vmatprep.subr.mxu0 0.0
    %385 = vmatpush1.msra.mxu0 0.0
    %386 = vmatprep.subr.mxu0 0.0
    %387 = vmatpush1.msra.mxu0 0.0
    %388 = vmatprep.subr.mxu0 0.0
    %389 = vmatpush1.msra.mxu0 0.0
    %390 = vmatprep.subr.mxu0 0.0
    %391 = vmatpush1.msra.mxu0 0.0
    %392 = vmatprep.subr.mxu0 0.0
    %393 = vmatpush1.msra.mxu0 0.0
    %394 = vmatprep.subr.mxu0 0.0
    %395 = vmatpush1.msra.mxu0 0.0
    %396 = vmatprep.subr.mxu0 0.0
    %397 = vmatpush1.msra.mxu0 0.0
    %398 = vmatprep.subr.mxu0 0.0
    %399 = vmatpush1.msra.mxu0 0.0
    %400 = vmatprep.subr.mxu0 0.0
    %401 = vmatpush1.msra.mxu0 0.0
    %402 = vmatprep.subr.mxu0 0.0
    %403 = vmatpush1.msra.mxu0 0.0
    %404 = vmatprep.subr.mxu0 0.0
    %405 = vmatpush1.msra.mxu0 0.0
    %406 = vmatprep.subr.mxu0 0.0
    %407 = vmatpush1.msra.mxu0 0.0
    %408 = vmatprep.subr.mxu0 0.0
    %409 = vmatpush1.msra.mxu0 0.0
    %410 = vmatprep.subr.mxu0 0.0
    %411 = vmatpush1.msra.mxu0 0.0
    %412 = vmatprep.subr.mxu0 0.0
    %413 = vmatpush1.msra.mxu0 0.0
    %414 = vmatprep.subr.mxu0 0.0
    %415 = vmatpush1.msra.mxu0 0.0
    %416 = vmatprep.subr.mxu0 0.0
    %417 = vmatpush1.msra.mxu0 0.0
    %418 = vmatprep.subr.mxu0 0.0
    %419 = vmatpush1.msra.mxu0 0.0
    %420 = vmatprep.subr.mxu0 0.0
    %421 = vmatpush1.msra.mxu0 0.0
    %422 = vmatprep.subr.mxu0 0.0
    %423 = vmatpush1.msra.mxu0 0.0
    %424 = vmatprep.subr.mxu0 0.0
    %425 = vmatpush1.msra.mxu0 0.0
    %426 = vmatprep.subr.mxu0 0.0
    %427 = vmatpush1.msra.mxu0 0.0
    %428 = vmatprep.subr.mxu0 0.0
    %429 = vmatpush1.msra.mxu0 0.0
    %430 = vmatprep.subr.mxu0 0.0
    %431 = vmatpush1.msra.mxu0 0.0
    %432 = vmatprep.subr.mxu0 0.0
    %433 = vmatpush1.msra.mxu0 0.0
    %434 = vmatprep.subr.mxu0 0.0
    %435 = vmatpush1.msra.mxu0 0.0
    %436 = vmatprep.subr.mxu0 0.0
    %437 = vmatpush1.msra.mxu0 0.0
    %438 = vmatprep.mubr.f32.mxu0 0.0
    %439 = vmatmul.mubr.f32.gmra.mrb[0].mxu0 %v372
    %v440 = vpop.f32.mrb[0].mxu0
    %v441 = vadd.f32 0.0, %v440
    %v442 = vpop.f32.mrb[0].mxu0
    %443 = vdwg.mxu0
    %v444 = vadd.f32 %v368, %v441
    %v445 = vmul.f32 %v444, %v256
    %v446 = vtanh.pop %v445
    %v447 = vmul.f32 %v446, 0.5
    %v448 = vadd.f32 %v447, 0.5
    %v449 = vsel %vm255, %v446, %v448
    %v450 = vmul.f32 %v449, %v348
    %452 = vrot.lane.b32.xlu0 %v449, 64
    %v453 = vpop.permute.xlu0 %452
    %v455 = vmul.f32 %v449, %v453
    %457 = vrot.lane.b32.xlu0 %v455, 32
    %v458 = vpop.permute.xlu0 %457
    %v460 = vadd.f32 %v450, %v458
    %v461 = vtanh.pop %v460
    %463 = vrot.lane.b32.xlu0 %v461, 64
    %v464 = vpop.permute.xlu0 %463
    %v466 = vmul.f32 %v449, %v464
    %s467 = scalar_lea.vmem %s1, 8
    %v468 = vld [vmem:[%s467] sm:$0xff]
    %470 = vset.pattern.permute.xlu0 0
    %471 = vperm.xlu0 %470, %v468
    %v472 = vpop.permute.xlu0 %471
    %v474 = vmul.f32 %v466, %v472
    %476 = vrot.lane.b32.xlu0 %v474, 32
    %v477 = vpop.permute.xlu0 %476
    %s479 = scalar_lea.vmem [#allocation3], 8
    %480 = vst.msk [vmem:[%s479] sm:$0xff] %vm258, %v477
    %s481 = scalar_lea.vmem [#allocation2], 16
    %v482 = vld [vmem:[%s481] sm:$0xff]
    %484 = vrot.lane.b32.xlu0 %v466, 32
    %v485 = vpop.permute.xlu0 %484
    %v486 = vsel %vm258, %v485, 0
    %488 = vmatprep.subr.mxu0 0.0
    %489 = vmatpush1.msra.mxu0 %v249
    %490 = vmatprep.subr.mxu0 0.0
    %491 = vmatpush1.msra.mxu0 %v250
    %492 = vmatprep.subr.mxu0 0.0
    %493 = vmatpush1.msra.mxu0 %v251
    %494 = vmatprep.subr.mxu0 0.0
    %495 = vmatpush1.msra.mxu0 %v252
    %496 = vmatprep.subr.mxu0 0.0
    %497 = vmatpush1.msra.mxu0 0.0
    %498 = vmatprep.subr.mxu0 0.0
    %499 = vmatpush1.msra.mxu0 0.0
    %500 = vmatprep.subr.mxu0 0.0
    %501 = vmatpush1.msra.mxu0 0.0
    %502 = vmatprep.subr.mxu0 0.0
    %503 = vmatpush1.msra.mxu0 0.0
    %504 = vmatprep.subr.mxu0 0.0
    %505 = vmatpush1.msra.mxu0 0.0
    %506 = vmatprep.subr.mxu0 0.0
    %507 = vmatpush1.msra.mxu0 0.0
    %508 = vmatprep.subr.mxu0 0.0
    %509 = vmatpush1.msra.mxu0 0.0
    %510 = vmatprep.subr.mxu0 0.0
    %511 = vmatpush1.msra.mxu0 0.0
    %512 = vmatprep.subr.mxu0 0.0
    %513 = vmatpush1.msra.mxu0 0.0
    %514 = vmatprep.subr.mxu0 0.0
    %515 = vmatpush1.msra.mxu0 0.0
    %516 = vmatprep.subr.mxu0 0.0
    %517 = vmatpush1.msra.mxu0 0.0
    %518 = vmatprep.subr.mxu0 0.0
    %519 = vmatpush1.msra.mxu0 0.0
    %520 = vmatprep.subr.mxu0 0.0
    %521 = vmatpush1.msra.mxu0 0.0
    %522 = vmatprep.subr.mxu0 0.0
    %523 = vmatpush1.msra.mxu0 0.0
    %524 = vmatprep.subr.mxu0 0.0
    %525 = vmatpush1.msra.mxu0 0.0
    %526 = vmatprep.subr.mxu0 0.0
    %527 = vmatpush1.msra.mxu0 0.0
    %528 = vmatprep.subr.mxu0 0.0
    %529 = vmatpush1.msra.mxu0 0.0
    %530 = vmatprep.subr.mxu0 0.0
    %531 = vmatpush1.msra.mxu0 0.0
    %532 = vmatprep.subr.mxu0 0.0
    %533 = vmatpush1.msra.mxu0 0.0
    %534 = vmatprep.subr.mxu0 0.0
    %535 = vmatpush1.msra.mxu0 0.0
    %536 = vmatprep.subr.mxu0 0.0
    %537 = vmatpush1.msra.mxu0 0.0
    %538 = vmatprep.subr.mxu0 0.0
    %539 = vmatpush1.msra.mxu0 0.0
    %540 = vmatprep.subr.mxu0 0.0
    %541 = vmatpush1.msra.mxu0 0.0
    %542 = vmatprep.subr.mxu0 0.0
    %543 = vmatpush1.msra.mxu0 0.0
    %544 = vmatprep.subr.mxu0 0.0
    %545 = vmatpush1.msra.mxu0 0.0
    %546 = vmatprep.subr.mxu0 0.0
    %547 = vmatpush1.msra.mxu0 0.0
    %548 = vmatprep.subr.mxu0 0.0
    %549 = vmatpush1.msra.mxu0 0.0
    %550 = vmatprep.subr.mxu0 0.0
    %551 = vmatpush1.msra.mxu0 0.0
    %552 = vmatprep.mubr.f32.mxu0 0.0
    %553 = vmatmul.mubr.f32.gmra.mrb[0].mxu0 %v486
    %v554 = vpop.f32.mrb[0].mxu0
    %v555 = vadd.f32 0.0, %v554
    %v556 = vpop.f32.mrb[0].mxu0
    %557 = vdwg.mxu0
    %v558 = vadd.f32 %v482, %v555
    %v559 = vmul.f32 %v558, %v256
    %v560 = vtanh.pop %v559
    %v561 = vmul.f32 %v560, 0.5
    %v562 = vadd.f32 %v561, 0.5
    %v563 = vsel %vm255, %v560, %v562
    %v564 = vmul.f32 %v563, %v460
    %566 = vrot.lane.b32.xlu0 %v563, 64
    %v567 = vpop.permute.xlu0 %566
    %v569 = vmul.f32 %v563, %v567
    %571 = vrot.lane.b32.xlu0 %v569, 32
    %v572 = vpop.permute.xlu0 %571
    %v574 = vadd.f32 %v564, %v572
    %v575 = vtanh.pop %v574
    %577 = vrot.lane.b32.xlu0 %v575, 64
    %v578 = vpop.permute.xlu0 %577
    %v580 = vmul.f32 %v563, %v578
    %s581 = scalar_lea.vmem %s1, 16
    %v582 = vld [vmem:[%s581] sm:$0xff]
    %584 = vset.pattern.permute.xlu0 0
    %585 = vperm.xlu0 %584, %v582
    %v586 = vpop.permute.xlu0 %585
    %v588 = vmul.f32 %v580, %v586
    %590 = vrot.lane.b32.xlu0 %v588, 32
    %v591 = vpop.permute.xlu0 %590
    %s593 = scalar_lea.vmem [#allocation3], 16
    %594 = vst.msk [vmem:[%s593] sm:$0xff] %vm258, %v591
    %s595 = scalar_lea.vmem [#allocation2], 24
    %v596 = vld [vmem:[%s595] sm:$0xff]
    %598 = vrot.lane.b32.xlu0 %v580, 32
    %v599 = vpop.permute.xlu0 %598
    %v600 = vsel %vm258, %v599, 0
    %602 = vmatprep.subr.mxu0 0.0
    %603 = vmatpush1.msra.mxu0 %v249
    %604 = vmatprep.subr.mxu0 0.0
    %605 = vmatpush1.msra.mxu0 %v250
    %606 = vmatprep.subr.mxu0 0.0
    %607 = vmatpush1.msra.mxu0 %v251
    %608 = vmatprep.subr.mxu0 0.0
    %609 = vmatpush1.msra.mxu0 %v252
    %610 = vmatprep.subr.mxu0 0.0
    %611 = vmatpush1.msra.mxu0 0.0
    %612 = vmatprep.subr.mxu0 0.0
    %613 = vmatpush1.msra.mxu0 0.0
    %614 = vmatprep.subr.mxu0 0.0
    %615 = vmatpush1.msra.mxu0 0.0
    %616 = vmatprep.subr.mxu0 0.0
    %617 = vmatpush1.msra.mxu0 0.0
    %618 = vmatprep.subr.mxu0 0.0
    %619 = vmatpush1.msra.mxu0 0.0
    %620 = vmatprep.subr.mxu0 0.0
    %621 = vmatpush1.msra.mxu0 0.0
    %622 = vmatprep.subr.mxu0 0.0
    %623 = vmatpush1.msra.mxu0 0.0
    %624 = vmatprep.subr.mxu0 0.0
    %625 = vmatpush1.msra.mxu0 0.0
    %626 = vmatprep.subr.mxu0 0.0
    %627 = vmatpush1.msra.mxu0 0.0
    %628 = vmatprep.subr.mxu0 0.0
    %629 = vmatpush1.msra.mxu0 0.0
    %630 = vmatprep.subr.mxu0 0.0
    %631 = vmatpush1.msra.mxu0 0.0
    %632 = vmatprep.subr.mxu0 0.0
    %633 = vmatpush1.msra.mxu0 0.0
    %634 = vmatprep.subr.mxu0 0.0
    %635 = vmatpush1.msra.mxu0 0.0
    %636 = vmatprep.subr.mxu0 0.0
    %637 = vmatpush1.msra.mxu0 0.0
    %638 = vmatprep.subr.mxu0 0.0
    %639 = vmatpush1.msra.mxu0 0.0
    %640 = vmatprep.subr.mxu0 0.0
    %641 = vmatpush1.msra.mxu0 0.0
    %642 = vmatprep.subr.mxu0 0.0
    %643 = vmatpush1.msra.mxu0 0.0
    %644 = vmatprep.subr.mxu0 0.0
    %645 = vmatpush1.msra.mxu0 0.0
    %646 = vmatprep.subr.mxu0 0.0
    %647 = vmatpush1.msra.mxu0 0.0
    %648 = vmatprep.subr.mxu0 0.0
    %649 = vmatpush1.msra.mxu0 0.0
    %650 = vmatprep.subr.mxu0 0.0
    %651 = vmatpush1.msra.mxu0 0.0
    %652 = vmatprep.subr.mxu0 0.0
    %653 = vmatpush1.msra.mxu0 0.0
    %654 = vmatprep.subr.mxu0 0.0
    %655 = vmatpush1.msra.mxu0 0.0
    %656 = vmatprep.subr.mxu0 0.0
    %657 = vmatpush1.msra.mxu0 0.0
    %658 = vmatprep.subr.mxu0 0.0
    %659 = vmatpush1.msra.mxu0 0.0
    %660 = vmatprep.subr.mxu0 0.0
    %661 = vmatpush1.msra.mxu0 0.0
    %662 = vmatprep.subr.mxu0 0.0
    %663 = vmatpush1.msra.mxu0 0.0
    %664 = vmatprep.subr.mxu0 0.0
    %665 = vmatpush1.msra.mxu0 0.0
    %666 = vmatprep.mubr.f32.mxu0 0.0
    %667 = vmatmul.mubr.f32.gmra.mrb[0].mxu0 %v600
    %v668 = vpop.f32.mrb[0].mxu0
    %v669 = vadd.f32 0.0, %v668
    %v670 = vpop.f32.mrb[0].mxu0
    %671 = vdwg.mxu0
    %v672 = vadd.f32 %v596, %v669
    %v673 = vmul.f32 %v672, %v256
    %v674 = vtanh.pop %v673
    %v675 = vmul.f32 %v674, 0.5
    %v676 = vadd.f32 %v675, 0.5
    %v677 = vsel %vm255, %v674, %v676
    %v678 = vmul.f32 %v677, %v574
    %680 = vrot.lane.b32.xlu0 %v677, 64
    %v681 = vpop.permute.xlu0 %680
    %v683 = vmul.f32 %v677, %v681
    %685 = vrot.lane.b32.xlu0 %v683, 32
    %v686 = vpop.permute.xlu0 %685
    %v688 = vadd.f32 %v678, %v686
    %v689 = vtanh.pop %v688
    %691 = vrot.lane.b32.xlu0 %v689, 64
    %v692 = vpop.permute.xlu0 %691
    %v694 = vmul.f32 %v677, %v692
    %s695 = scalar_lea.vmem %s1, 24
    %v696 = vld [vmem:[%s695] sm:$0xff]
    %698 = vset.pattern.permute.xlu0 0
    %699 = vperm.xlu0 %698, %v696
    %v700 = vpop.permute.xlu0 %699
    %v702 = vmul.f32 %v694, %v700
    %704 = vrot.lane.b32.xlu0 %v702, 32
    %v705 = vpop.permute.xlu0 %704
    %s707 = scalar_lea.vmem [#allocation3], 24
    %708 = vst.msk [vmem:[%s707] sm:$0xff] %vm258, %v705
    %s709 = scalar_lea.vmem [#allocation2], 32
    %v710 = vld [vmem:[%s709] sm:$0xff]
    %712 = vrot.lane.b32.xlu0 %v694, 32
    %v713 = vpop.permute.xlu0 %712
    %v714 = vsel %vm258, %v713, 0
    %716 = vmatprep.subr.mxu0 0.0
    %717 = vmatpush1.msra.mxu0 %v249
    %718 = vmatprep.subr.mxu0 0.0
    %719 = vmatpush1.msra.mxu0 %v250
    %720 = vmatprep.subr.mxu0 0.0
    %721 = vmatpush1.msra.mxu0 %v251
    %722 = vmatprep.subr.mxu0 0.0
    %723 = vmatpush1.msra.mxu0 %v252
    %724 = vmatprep.subr.mxu0 0.0
    %725 = vmatpush1.msra.mxu0 0.0
    %726 = vmatprep.subr.mxu0 0.0
    %727 = vmatpush1.msra.mxu0 0.0
    %728 = vmatprep.subr.mxu0 0.0
    %729 = vmatpush1.msra.mxu0 0.0
    %730 = vmatprep.subr.mxu0 0.0
    %731 = vmatpush1.msra.mxu0 0.0
    %732 = vmatprep.subr.mxu0 0.0
    %733 = vmatpush1.msra.mxu0 0.0
    %734 = vmatprep.subr.mxu0 0.0
    %735 = vmatpush1.msra.mxu0 0.0
    %736 = vmatprep.subr.mxu0 0.0
    %737 = vmatpush1.msra.mxu0 0.0
    %738 = vmatprep.subr.mxu0 0.0
    %739 = vmatpush1.msra.mxu0 0.0
    %740 = vmatprep.subr.mxu0 0.0
    %741 = vmatpush1.msra.mxu0 0.0
    %742 = vmatprep.subr.mxu0 0.0
    %743 = vmatpush1.msra.mxu0 0.0
    %744 = vmatprep.subr.mxu0 0.0
    %745 = vmatpush1.msra.mxu0 0.0
    %746 = vmatprep.subr.mxu0 0.0
    %747 = vmatpush1.msra.mxu0 0.0
    %748 = vmatprep.subr.mxu0 0.0
    %749 = vmatpush1.msra.mxu0 0.0
    %750 = vmatprep.subr.mxu0 0.0
    %751 = vmatpush1.msra.mxu0 0.0
    %752 = vmatprep.subr.mxu0 0.0
    %753 = vmatpush1.msra.mxu0 0.0
    %754 = vmatprep.subr.mxu0 0.0
    %755 = vmatpush1.msra.mxu0 0.0
    %756 = vmatprep.subr.mxu0 0.0
    %757 = vmatpush1.msra.mxu0 0.0
    %758 = vmatprep.subr.mxu0 0.0
    %759 = vmatpush1.msra.mxu0 0.0
    %760 = vmatprep.subr.mxu0 0.0
    %761 = vmatpush1.msra.mxu0 0.0
    %762 = vmatprep.subr.mxu0 0.0
    %763 = vmatpush1.msra.mxu0 0.0
    %764 = vmatprep.subr.mxu0 0.0
    %765 = vmatpush1.msra.mxu0 0.0
    %766 = vmatprep.subr.mxu0 0.0
    %767 = vmatpush1.msra.mxu0 0.0
    %768 = vmatprep.subr.mxu0 0.0
    %769 = vmatpush1.msra.mxu0 0.0
    %770 = vmatprep.subr.mxu0 0.0
    %771 = vmatpush1.msra.mxu0 0.0
    %772 = vmatprep.subr.mxu0 0.0
    %773 = vmatpush1.msra.mxu0 0.0
    %774 = vmatprep.subr.mxu0 0.0
    %775 = vmatpush1.msra.mxu0 0.0
    %776 = vmatprep.subr.mxu0 0.0
    %777 = vmatpush1.msra.mxu0 0.0
    %778 = vmatprep.subr.mxu0 0.0
    %779 = vmatpush1.msra.mxu0 0.0
    %780 = vmatprep.mubr.f32.mxu0 0.0
    %781 = vmatmul.mubr.f32.gmra.mrb[0].mxu0 %v714
    %v782 = vpop.f32.mrb[0].mxu0
    %v783 = vadd.f32 0.0, %v782
    %v784 = vpop.f32.mrb[0].mxu0
    %785 = vdwg.mxu0
    %v786 = vadd.f32 %v710, %v783
    %v787 = vmul.f32 %v786, %v256
    %v788 = vtanh.pop %v787
    %v789 = vmul.f32 %v788, 0.5
    %v790 = vadd.f32 %v789, 0.5
    %v791 = vsel %vm255, %v788, %v790
    %v792 = vmul.f32 %v791, %v688
    %794 = vrot.lane.b32.xlu0 %v791, 64
    %v795 = vpop.permute.xlu0 %794
    %v797 = vmul.f32 %v791, %v795
    %799 = vrot.lane.b32.xlu0 %v797, 32
    %v800 = vpop.permute.xlu0 %799
    %v802 = vadd.f32 %v792, %v800
    %v803 = vtanh.pop %v802
    %805 = vrot.lane.b32.xlu0 %v803, 64
    %v806 = vpop.permute.xlu0 %805
    %v808 = vmul.f32 %v791, %v806
    %s809 = scalar_lea.vmem %s1, 32
    %v810 = vld [vmem:[%s809] sm:$0xff]
    %812 = vset.pattern.permute.xlu0 0
    %813 = vperm.xlu0 %812, %v810
    %v814 = vpop.permute.xlu0 %813
    %v816 = vmul.f32 %v808, %v814
    %818 = vrot.lane.b32.xlu0 %v816, 32
    %v819 = vpop.permute.xlu0 %818
    %s821 = scalar_lea.vmem [#allocation3], 32
    %822 = vst.msk [vmem:[%s821] sm:$0xff] %vm258, %v819
    %s823 = scalar_lea.vmem [#allocation2], 40
    %v824 = vld [vmem:[%s823] sm:$0xff]
    %826 = vrot.lane.b32.xlu0 %v808, 32
    %v827 = vpop.permute.xlu0 %826
    %v828 = vsel %vm258, %v827, 0
    %830 = vmatprep.subr.mxu0 0.0
    %831 = vmatpush1.msra.mxu0 %v249
    %832 = vmatprep.subr.mxu0 0.0
    %833 = vmatpush1.msra.mxu0 %v250
    %834 = vmatprep.subr.mxu0 0.0
    %835 = vmatpush1.msra.mxu0 %v251
    %836 = vmatprep.subr.mxu0 0.0
    %837 = vmatpush1.msra.mxu0 %v252
    %838 = vmatprep.subr.mxu0 0.0
    %839 = vmatpush1.msra.mxu0 0.0
    %840 = vmatprep.subr.mxu0 0.0
    %841 = vmatpush1.msra.mxu0 0.0
    %842 = vmatprep.subr.mxu0 0.0
    %843 = vmatpush1.msra.mxu0 0.0
    %844 = vmatprep.subr.mxu0 0.0
    %845 = vmatpush1.msra.mxu0 0.0
    %846 = vmatprep.subr.mxu0 0.0
    %847 = vmatpush1.msra.mxu0 0.0
    %848 = vmatprep.subr.mxu0 0.0
    %849 = vmatpush1.msra.mxu0 0.0
    %850 = vmatprep.subr.mxu0 0.0
    %851 = vmatpush1.msra.mxu0 0.0
    %852 = vmatprep.subr.mxu0 0.0
    %853 = vmatpush1.msra.mxu0 0.0
    %854 = vmatprep.subr.mxu0 0.0
    %855 = vmatpush1.msra.mxu0 0.0
    %856 = vmatprep.subr.mxu0 0.0
    %857 = vmatpush1.msra.mxu0 0.0
    %858 = vmatprep.subr.mxu0 0.0
    %859 = vmatpush1.msra.mxu0 0.0
    %860 = vmatprep.subr.mxu0 0.0
    %861 = vmatpush1.msra.mxu0 0.0
    %862 = vmatprep.subr.mxu0 0.0
    %863 = vmatpush1.msra.mxu0 0.0
    %864 = vmatprep.subr.mxu0 0.0
    %865 = vmatpush1.msra.mxu0 0.0
    %866 = vmatprep.subr.mxu0 0.0
    %867 = vmatpush1.msra.mxu0 0.0
    %868 = vmatprep.subr.mxu0 0.0
    %869 = vmatpush1.msra.mxu0 0.0
    %870 = vmatprep.subr.mxu0 0.0
    %871 = vmatpush1.msra.mxu0 0.0
    %872 = vmatprep.subr.mxu0 0.0
    %873 = vmatpush1.msra.mxu0 0.0
    %874 = vmatprep.subr.mxu0 0.0
    %875 = vmatpush1.msra.mxu0 0.0
    %876 = vmatprep.subr.mxu0 0.0
    %877 = vmatpush1.msra.mxu0 0.0
    %878 = vmatprep.subr.mxu0 0.0
    %879 = vmatpush1.msra.mxu0 0.0
    %880 = vmatprep.subr.mxu0 0.0
    %881 = vmatpush1.msra.mxu0 0.0
    %882 = vmatprep.subr.mxu0 0.0
    %883 = vmatpush1.msra.mxu0 0.0
    %884 = vmatprep.subr.mxu0 0.0
    %885 = vmatpush1.msra.mxu0 0.0
    %886 = vmatprep.subr.mxu0 0.0
    %887 = vmatpush1.msra.mxu0 0.0
    %888 = vmatprep.subr.mxu0 0.0
    %889 = vmatpush1.msra.mxu0 0.0
    %890 = vmatprep.subr.mxu0 0.0
    %891 = vmatpush1.msra.mxu0 0.0
    %892 = vmatprep.subr.mxu0 0.0
    %893 = vmatpush1.msra.mxu0 0.0
    %894 = vmatprep.mubr.f32.mxu0 0.0
    %895 = vmatmul.mubr.f32.gmra.mrb[0].mxu0 %v828
    %v896 = vpop.f32.mrb[0].mxu0
    %v897 = vadd.f32 0.0, %v896
    %v898 = vpop.f32.mrb[0].mxu0
    %899 = vdwg.mxu0
    %v900 = vadd.f32 %v824, %v897
    %v901 = vmul.f32 %v900, %v256
    %v902 = vtanh.pop %v901
    %v903 = vmul.f32 %v902, 0.5
    %v904 = vadd.f32 %v903, 0.5
    %v905 = vsel %vm255, %v902, %v904
    %v906 = vmul.f32 %v905, %v802
    %908 = vrot.lane.b32.xlu0 %v905, 64
    %v909 = vpop.permute.xlu0 %908
    %v911 = vmul.f32 %v905, %v909
    %913 = vrot.lane.b32.xlu0 %v911, 32
    %v914 = vpop.permute.xlu0 %913
    %v916 = vadd.f32 %v906, %v914
    %v917 = vtanh.pop %v916
    %919 = vrot.lane.b32.xlu0 %v917, 64
    %v920 = vpop.permute.xlu0 %919
    %v922 = vmul.f32 %v905, %v920
    %s923 = scalar_lea.vmem %s1, 40
    %v924 = vld [vmem:[%s923] sm:$0xff]
    %926 = vset.pattern.permute.xlu0 0
    %927 = vperm.xlu0 %926, %v924
    %v928 = vpop.permute.xlu0 %927
    %v930 = vmul.f32 %v922, %v928
    %932 = vrot.lane.b32.xlu0 %v930, 32
    %v933 = vpop.permute.xlu0 %932
    %s935 = scalar_lea.vmem [#allocation3], 40
    %936 = vst.msk [vmem:[%s935] sm:$0xff] %vm258, %v933
    %s937 = scalar_lea.vmem [#allocation2], 48
    %v938 = vld [vmem:[%s937] sm:$0xff]
    %940 = vrot.lane.b32.xlu0 %v922, 32
    %v941 = vpop.permute.xlu0 %940
    %v942 = vsel %vm258, %v941, 0
    %944 = vmatprep.subr.mxu0 0.0
    %945 = vmatpush1.msra.mxu0 %v249
    %946 = vmatprep.subr.mxu0 0.0
    %947 = vmatpush1.msra.mxu0 %v250
    %948 = vmatprep.subr.mxu0 0.0
    %949 = vmatpush1.msra.mxu0 %v251
    %950 = vmatprep.subr.mxu0 0.0
    %951 = vmatpush1.msra.mxu0 %v252
    %952 = vmatprep.subr.mxu0 0.0
    %953 = vmatpush1.msra.mxu0 0.0
    %954 = vmatprep.subr.mxu0 0.0
    %955 = vmatpush1.msra.mxu0 0.0
    %956 = vmatprep.subr.mxu0 0.0
    %957 = vmatpush1.msra.mxu0 0.0
    %958 = vmatprep.subr.mxu0 0.0
    %959 = vmatpush1.msra.mxu0 0.0
    %960 = vmatprep.subr.mxu0 0.0
    %961 = vmatpush1.msra.mxu0 0.0
    %962 = vmatprep.subr.mxu0 0.0
    %963 = vmatpush1.msra.mxu0 0.0
    %964 = vmatprep.subr.mxu0 0.0
    %965 = vmatpush1.msra.mxu0 0.0
    %966 = vmatprep.subr.mxu0 0.0
    %967 = vmatpush1.msra.mxu0 0.0
    %968 = vmatprep.subr.mxu0 0.0
    %969 = vmatpush1.msra.mxu0 0.0
    %970 = vmatprep.subr.mxu0 0.0
    %971 = vmatpush1.msra.mxu0 0.0
    %972 = vmatprep.subr.mxu0 0.0
    %973 = vmatpush1.msra.mxu0 0.0
    %974 = vmatprep.subr.mxu0 0.0
    %975 = vmatpush1.msra.mxu0 0.0
    %976 = vmatprep.subr.mxu0 0.0
    %977 = vmatpush1.msra.mxu0 0.0
    %978 = vmatprep.subr.mxu0 0.0
    %979 = vmatpush1.msra.mxu0 0.0
    %980 = vmatprep.subr.mxu0 0.0
    %981 = vmatpush1.msra.mxu0 0.0
    %982 = vmatprep.subr.mxu0 0.0
    %983 = vmatpush1.msra.mxu0 0.0
    %984 = vmatprep.subr.mxu0 0.0
    %985 = vmatpush1.msra.mxu0 0.0
    %986 = vmatprep.subr.mxu0 0.0
    %987 = vmatpush1.msra.mxu0 0.0
    %988 = vmatprep.subr.mxu0 0.0
    %989 = vmatpush1.msra.mxu0 0.0
    %990 = vmatprep.subr.mxu0 0.0
    %991 = vmatpush1.msra.mxu0 0.0
    %992 = vmatprep.subr.mxu0 0.0
    %993 = vmatpush1.msra.mxu0 0.0
    %994 = vmatprep.subr.mxu0 0.0
    %995 = vmatpush1.msra.mxu0 0.0
    %996 = vmatprep.subr.mxu0 0.0
    %997 = vmatpush1.msra.mxu0 0.0
    %998 = vmatprep.subr.mxu0 0.0
    %999 = vmatpush1.msra.mxu0 0.0
    %1000 = vmatprep.subr.mxu0 0.0
    %1001 = vmatpush1.msra.mxu0 0.0
    %1002 = vmatprep.subr.mxu0 0.0
    %1003 = vmatpush1.msra.mxu0 0.0
    %1004 = vmatprep.subr.mxu0 0.0
    %1005 = vmatpush1.msra.mxu0 0.0
    %1006 = vmatprep.subr.mxu0 0.0
    %1007 = vmatpush1.msra.mxu0 0.0
    %1008 = vmatprep.mubr.f32.mxu0 0.0
    %1009 = vmatmul.mubr.f32.gmra.mrb[0].mxu0 %v942
    %v1010 = vpop.f32.mrb[0].mxu0
    %v1011 = vadd.f32 0.0, %v1010
    %v1012 = vpop.f32.mrb[0].mxu0
    %1013 = vdwg.mxu0
    %v1014 = vadd.f32 %v938, %v1011
    %v1015 = vmul.f32 %v1014, %v256
    %v1016 = vtanh.pop %v1015
    %v1017 = vmul.f32 %v1016, 0.5
    %v1018 = vadd.f32 %v1017, 0.5
    %v1019 = vsel %vm255, %v1016, %v1018
    %v1020 = vmul.f32 %v1019, %v916
    %1022 = vrot.lane.b32.xlu0 %v1019, 64
    %v1023 = vpop.permute.xlu0 %1022
    %v1025 = vmul.f32 %v1019, %v1023
    %1027 = vrot.lane.b32.xlu0 %v1025, 32
    %v1028 = vpop.permute.xlu0 %1027
    %v1030 = vadd.f32 %v1020, %v1028
    %v1031 = vtanh.pop %v1030
    %1033 = vrot.lane.b32.xlu0 %v1031, 64
    %v1034 = vpop.permute.xlu0 %1033
    %v1036 = vmul.f32 %v1019, %v1034
    %s1037 = scalar_lea.vmem %s1, 48
    %v1038 = vld [vmem:[%s1037] sm:$0xff]
    %1040 = vset.pattern.permute.xlu0 0
    %1041 = vperm.xlu0 %1040, %v1038
    %v1042 = vpop.permute.xlu0 %1041
    %v1044 = vmul.f32 %v1036, %v1042
    %1046 = vrot.lane.b32.xlu0 %v1044, 32
    %v1047 = vpop.permute.xlu0 %1046
    %s1049 = scalar_lea.vmem [#allocation3], 48
    %1050 = vst.msk [vmem:[%s1049] sm:$0xff] %vm258, %v1047
    %s1051 = scalar_lea.vmem [#allocation2], 56
    %v1052 = vld [vmem:[%s1051] sm:$0xff]
    %1054 = vrot.lane.b32.xlu0 %v1036, 32
    %v1055 = vpop.permute.xlu0 %1054
    %v1056 = vsel %vm258, %v1055, 0
    %1058 = vmatprep.subr.mxu0 0.0
    %1059 = vmatpush1.msra.mxu0 %v249
    %1060 = vmatprep.subr.mxu0 0.0
    %1061 = vmatpush1.msra.mxu0 %v250
    %1062 = vmatprep.subr.mxu0 0.0
    %1063 = vmatpush1.msra.mxu0 %v251
    %1064 = vmatprep.subr.mxu0 0.0
    %1065 = vmatpush1.msra.mxu0 %v252
    %1066 = vmatprep.subr.mxu0 0.0
    %1067 = vmatpush1.msra.mxu0 0.0
    %1068 = vmatprep.subr.mxu0 0.0
    %1069 = vmatpush1.msra.mxu0 0.0
    %1070 = vmatprep.subr.mxu0 0.0
    %1071 = vmatpush1.msra.mxu0 0.0
    %1072 = vmatprep.subr.mxu0 0.0
    %1073 = vmatpush1.msra.mxu0 0.0
    %1074 = vmatprep.subr.mxu0 0.0
    %1075 = vmatpush1.msra.mxu0 0.0
    %1076 = vmatprep.subr.mxu0 0.0
    %1077 = vmatpush1.msra.mxu0 0.0
    %1078 = vmatprep.subr.mxu0 0.0
    %1079 = vmatpush1.msra.mxu0 0.0
    %1080 = vmatprep.subr.mxu0 0.0
    %1081 = vmatpush1.msra.mxu0 0.0
    %1082 = vmatprep.subr.mxu0 0.0
    %1083 = vmatpush1.msra.mxu0 0.0
    %1084 = vmatprep.subr.mxu0 0.0
    %1085 = vmatpush1.msra.mxu0 0.0
    %1086 = vmatprep.subr.mxu0 0.0
    %1087 = vmatpush1.msra.mxu0 0.0
    %1088 = vmatprep.subr.mxu0 0.0
    %1089 = vmatpush1.msra.mxu0 0.0
    %1090 = vmatprep.subr.mxu0 0.0
    %1091 = vmatpush1.msra.mxu0 0.0
    %1092 = vmatprep.subr.mxu0 0.0
    %1093 = vmatpush1.msra.mxu0 0.0
    %1094 = vmatprep.subr.mxu0 0.0
    %1095 = vmatpush1.msra.mxu0 0.0
    %1096 = vmatprep.subr.mxu0 0.0
    %1097 = vmatpush1.msra.mxu0 0.0
    %1098 = vmatprep.subr.mxu0 0.0
    %1099 = vmatpush1.msra.mxu0 0.0
    %1100 = vmatprep.subr.mxu0 0.0
    %1101 = vmatpush1.msra.mxu0 0.0
    %1102 = vmatprep.subr.mxu0 0.0
    %1103 = vmatpush1.msra.mxu0 0.0
    %1104 = vmatprep.subr.mxu0 0.0
    %1105 = vmatpush1.msra.mxu0 0.0
    %1106 = vmatprep.subr.mxu0 0.0
    %1107 = vmatpush1.msra.mxu0 0.0
    %1108 = vmatprep.subr.mxu0 0.0
    %1109 = vmatpush1.msra.mxu0 0.0
    %1110 = vmatprep.subr.mxu0 0.0
    %1111 = vmatpush1.msra.mxu0 0.0
    %1112 = vmatprep.subr.mxu0 0.0
    %1113 = vmatpush1.msra.mxu0 0.0
    %1114 = vmatprep.subr.mxu0 0.0
    %1115 = vmatpush1.msra.mxu0 0.0
    %1116 = vmatprep.subr.mxu0 0.0
    %1117 = vmatpush1.msra.mxu0 0.0
    %1118 = vmatprep.subr.mxu0 0.0
    %1119 = vmatpush1.msra.mxu0 0.0
    %1120 = vmatprep.subr.mxu0 0.0
    %1121 = vmatpush1.msra.mxu0 0.0
    %1122 = vmatprep.mubr.f32.mxu0 0.0
    %1123 = vmatmul.mubr.f32.gmra.mrb[0].mxu0 %v1056
    %v1124 = vpop.f32.mrb[0].mxu0
    %v1125 = vadd.f32 0.0, %v1124
    %v1126 = vpop.f32.mrb[0].mxu0
    %1127 = vdwg.mxu0
    %v1128 = vadd.f32 %v1052, %v1125
    %v1129 = vmul.f32 %v1128, %v256
    %v1130 = vtanh.pop %v1129
    %v1131 = vmul.f32 %v1130, 0.5
    %v1132 = vadd.f32 %v1131, 0.5
    %v1133 = vsel %vm255, %v1130, %v1132
    %v1134 = vmul.f32 %v1133, %v1030
    %1136 = vrot.lane.b32.xlu0 %v1133, 64
    %v1137 = vpop.permute.xlu0 %1136
    %v1139 = vmul.f32 %v1133, %v1137
    %1141 = vrot.lane.b32.xlu0 %v1139, 32
    %v1142 = vpop.permute.xlu0 %1141
    %v1144 = vadd.f32 %v1134, %v1142
    %v1145 = vtanh.pop %v1144
    %1147 = vrot.lane.b32.xlu0 %v1145, 64
    %v1148 = vpop.permute.xlu0 %1147
    %v1150 = vmul.f32 %v1133, %v1148
    %s1151 = scalar_lea.vmem %s1, 56
    %v1152 = vld [vmem:[%s1151] sm:$0xff]
    %1154 = vset.pattern.permute.xlu0 0
    %1155 = vperm.xlu0 %1154, %v1152
    %v1156 = vpop.permute.xlu0 %1155
    %v1158 = vmul.f32 %v1150, %v1156
    %1160 = vrot.lane.b32.xlu0 %v1158, 32
    %v1161 = vpop.permute.xlu0 %1160
    %s1163 = scalar_lea.vmem [#allocation3], 56
    %1164 = vst.msk [vmem:[%s1163] sm:$0xff] %vm258, %v1161
    %v1165 = vld [vmem:[#allocation3] sm:$0xff]
    %v1166 = vld [vmem:[#allocation3 + $0x8] sm:$0xff]
    %v1167 = vld [vmem:[#allocation3 + $0x10] sm:$0xff]
    %v1168 = vld [vmem:[#allocation3 + $0x18] sm:$0xff]
    %v1169 = vld [vmem:[#allocation3 + $0x20] sm:$0xff]
    %v1170 = vld [vmem:[#allocation3 + $0x28] sm:$0xff]
    %v1171 = vld [vmem:[#allocation3 + $0x30] sm:$0xff]
    %v1172 = vld [vmem:[#allocation3 + $0x38] sm:$0xff]
    %v1173 = vld [vmem:[#allocation7] sm:$0xff]
    %v1174 = vld [vmem:[#allocation7 + $0x8] sm:$0xff]
    %v1175 = vld [vmem:[#allocation7 + $0x10] sm:$0xff]
    %v1176 = vld [vmem:[#allocation7 + $0x18] sm:$0xff]
    %v1177 = vld [vmem:[%s6] sm:$0x1]
    %v1179 = vlaneseq
    %v1180 = vshrl.u32 %v1179, 7
    %v1181 = vsub.s32 0, %v1180
    %v1182 = vrot.slane %v1177, %v1181
    %v1185 = vsel %vm258, %v1165, 0
    %v1188 = vsel %vm258, %v1166, 0
    %v1191 = vsel %vm258, %v1167, 0
    %v1194 = vsel %vm258, %v1168, 0
    %v1197 = vsel %vm258, %v1169, 0
    %v1200 = vsel %vm258, %v1170, 0
    %v1203 = vsel %vm258, %v1171, 0
    %v1206 = vsel %vm258, %v1172, 0
    %1208 = vmatprep.subr.mxu0 0.0
    %1209 = vmatpush1.msra.mxu0 %v1173
    %1210 = vmatprep.subr.mxu0 0.0
    %1211 = vmatpush1.msra.mxu0 %v1174
    %1212 = vmatprep.subr.mxu0 0.0
    %1213 = vmatpush1.msra.mxu0 %v1175
    %1214 = vmatprep.subr.mxu0 0.0
    %1215 = vmatpush1.msra.mxu0 %v1176
    %1216 = vmatprep.subr.mxu0 0.0
    %1217 = vmatpush1.msra.mxu0 0.0
    %1218 = vmatprep.subr.mxu0 0.0
    %1219 = vmatpush1.msra.mxu0 0.0
    %1220 = vmatprep.subr.mxu0 0.0
    %1221 = vmatpush1.msra.mxu0 0.0
    %1222 = vmatprep.subr.mxu0 0.0
    %1223 = vmatpush1.msra.mxu0 0.0
    %1224 = vmatprep.subr.mxu0 0.0
    %1225 = vmatpush1.msra.mxu0 0.0
    %1226 = vmatprep.subr.mxu0 0.0
    %1227 = vmatpush1.msra.mxu0 0.0
    %1228 = vmatprep.subr.mxu0 0.0
    %1229 = vmatpush1.msra.mxu0 0.0
    %1230 = vmatprep.subr.mxu0 0.0
    %1231 = vmatpush1.msra.mxu0 0.0
    %1232 = vmatprep.subr.mxu0 0.0
    %1233 = vmatpush1.msra.mxu0 0.0
    %1234 = vmatprep.subr.mxu0 0.0
    %1235 = vmatpush1.msra.mxu0 0.0
    %1236 = vmatprep.subr.mxu0 0.0
    %1237 = vmatpush1.msra.mxu0 0.0
    %1238 = vmatprep.subr.mxu0 0.0
    %1239 = vmatpush1.msra.mxu0 0.0
    %1240 = vmatprep.subr.mxu0 0.0
    %1241 = vmatpush1.msra.mxu0 0.0
    %1242 = vmatprep.subr.mxu0 0.0
    %1243 = vmatpush1.msra.mxu0 0.0
    %1244 = vmatprep.subr.mxu0 0.0
    %1245 = vmatpush1.msra.mxu0 0.0
    %1246 = vmatprep.subr.mxu0 0.0
    %1247 = vmatpush1.msra.mxu0 0.0
    %1248 = vmatprep.subr.mxu0 0.0
    %1249 = vmatpush1.msra.mxu0 0.0
    %1250 = vmatprep.subr.mxu0 0.0
    %1251 = vmatpush1.msra.mxu0 0.0
    %1252 = vmatprep.subr.mxu0 0.0
    %1253 = vmatpush1.msra.mxu0 0.0
    %1254 = vmatprep.subr.mxu0 0.0
    %1255 = vmatpush1.msra.mxu0 0.0
    %1256 = vmatprep.subr.mxu0 0.0
    %1257 = vmatpush1.msra.mxu0 0.0
    %1258 = vmatprep.subr.mxu0 0.0
    %1259 = vmatpush1.msra.mxu0 0.0
    %1260 = vmatprep.subr.mxu0 0.0
    %1261 = vmatpush1.msra.mxu0 0.0
    %1262 = vmatprep.subr.mxu0 0.0
    %1263 = vmatpush1.msra.mxu0 0.0
    %1264 = vmatprep.subr.mxu0 0.0
    %1265 = vmatpush1.msra.mxu0 0.0
    %1266 = vmatprep.subr.mxu0 0.0
    %1267 = vmatpush1.msra.mxu0 0.0
    %1268 = vmatprep.subr.mxu0 0.0
    %1269 = vmatpush1.msra.mxu0 0.0
    %1270 = vmatprep.subr.mxu0 0.0
    %1271 = vmatpush1.msra.mxu0 0.0
    %1272 = vmatprep.mubr.f32.mxu0 0.0
    %1273 = vmatmul.mubr.f32.gmra.mrb[0].mxu0 %v1185
    %v1274 = vpop.f32.mrb[0].mxu0
    %v1275 = vadd.f32 %v1182, %v1274
    %v1276 = vpop.f32.mrb[0].mxu0
    %1277 = vmatprep.mubr.f32.mxu0 0.0
    %1278 = vmatmul.mubr.f32.gmra.mrb[0].mxu0 %v1188
    %v1279 = vpop.f32.mrb[0].mxu0
    %v1280 = vadd.f32 %v1182, %v1279
    %v1281 = vpop.f32.mrb[0].mxu0
    %1282 = vmatprep.mubr.f32.mxu0 0.0
    %1283 = vmatmul.mubr.f32.gmra.mrb[0].mxu0 %v1191
    %v1284 = vpop.f32.mrb[0].mxu0
    %v1285 = vadd.f32 %v1182, %v1284
    %v1286 = vpop.f32.mrb[0].mxu0
    %1287 = vmatprep.mubr.f32.mxu0 0.0
    %1288 = vmatmul.mubr.f32.gmra.mrb[0].mxu0 %v1194
    %v1289 = vpop.f32.mrb[0].mxu0
    %v1290 = vadd.f32 %v1182, %v1289
    %v1291 = vpop.f32.mrb[0].mxu0
    %1292 = vmatprep.mubr.f32.mxu0 0.0
    %1293 = vmatmul.mubr.f32.gmra.mrb[0].mxu0 %v1197
    %v1294 = vpop.f32.mrb[0].mxu0
    %v1295 = vadd.f32 %v1182, %v1294
    %v1296 = vpop.f32.mrb[0].mxu0
    %1297 = vmatprep.mubr.f32.mxu0 0.0
    %1298 = vmatmul.mubr.f32.gmra.mrb[0].mxu0 %v1200
    %v1299 = vpop.f32.mrb[0].mxu0
    %v1300 = vadd.f32 %v1182, %v1299
    %v1301 = vpop.f32.mrb[0].mxu0
    %1302 = vmatprep.mubr.f32.mxu0 0.0
    %1303 = vmatmul.mubr.f32.gmra.mrb[0].mxu0 %v1203
    %v1304 = vpop.f32.mrb[0].mxu0
    %v1305 = vadd.f32 %v1182, %v1304
    %v1306 = vpop.f32.mrb[0].mxu0
    %1307 = vmatprep.mubr.f32.mxu0 0.0
    %1308 = vmatmul.mubr.f32.gmra.mrb[0].mxu0 %v1206
    %v1309 = vpop.f32.mrb[0].mxu0
    %v1310 = vadd.f32 %v1182, %v1309
    %v1311 = vpop.f32.mrb[0].mxu0
    %1312 = vdwg.mxu0
    %1313 = vmax.xlane.f32.xlu0 %v1275
    %v1314 = vpop.xlane.xlu0 %1313
    %1315 = vmax.xlane.f32.xlu0 %v1280
    %v1316 = vpop.xlane.xlu0 %1315
    %1317 = vmax.xlane.f32.xlu0 %v1285
    %v1318 = vpop.xlane.xlu0 %1317
    %1319 = vmax.xlane.f32.xlu0 %v1290
    %v1320 = vpop.xlane.xlu0 %1319
    %1321 = vmax.xlane.f32.xlu0 %v1295
    %v1322 = vpop.xlane.xlu0 %1321
    %1323 = vmax.xlane.f32.xlu0 %v1300
    %v1324 = vpop.xlane.xlu0 %1323
    %1325 = vmax.xlane.f32.xlu0 %v1305
    %v1326 = vpop.xlane.xlu0 %1325
    %1327 = vmax.xlane.f32.xlu0 %v1310
    %v1328 = vpop.xlane.xlu0 %1327
    %v1329 = vsub.f32 %v1275, %v1314
    %v1330 = vsub.f32 %v1280, %v1316
    %v1331 = vsub.f32 %v1285, %v1318
    %v1332 = vsub.f32 %v1290, %v1320
    %v1333 = vsub.f32 %v1295, %v1322
    %v1334 = vsub.f32 %v1300, %v1324
    %v1335 = vsub.f32 %v1305, %v1326
    %v1336 = vsub.f32 %v1310, %v1328
    %v1337 = vmul.f32 %v1329, 1.442695
    %v1338 = vpow.pop %v1337
    %v1339 = vmul.f32 %v1330, 1.442695
    %v1340 = vpow.pop %v1339
    %v1341 = vmul.f32 %v1331, 1.442695
    %v1342 = vpow.pop %v1341
    %v1343 = vmul.f32 %v1332, 1.442695
    %v1344 = vpow.pop %v1343
    %v1345 = vmul.f32 %v1333, 1.442695
    %v1346 = vpow.pop %v1345
    %v1347 = vmul.f32 %v1334, 1.442695
    %v1348 = vpow.pop %v1347
    %v1349 = vmul.f32 %v1335, 1.442695
    %v1350 = vpow.pop %v1349
    %v1351 = vmul.f32 %v1336, 1.442695
    %v1352 = vpow.pop %v1351
    %1353 = vadd.xlane.f32.xlu0 %v1338
    %v1354 = vpop.xlane.xlu0 %1353
    %1355 = vadd.xlane.f32.xlu0 %v1340
    %v1356 = vpop.xlane.xlu0 %1355
    %1357 = vadd.xlane.f32.xlu0 %v1342
    %v1358 = vpop.xlane.xlu0 %1357
    %1359 = vadd.xlane.f32.xlu0 %v1344
    %v1360 = vpop.xlane.xlu0 %1359
    %1361 = vadd.xlane.f32.xlu0 %v1346
    %v1362 = vpop.xlane.xlu0 %1361
    %1363 = vadd.xlane.f32.xlu0 %v1348
    %v1364 = vpop.xlane.xlu0 %1363
    %1365 = vadd.xlane.f32.xlu0 %v1350
    %v1366 = vpop.xlane.xlu0 %1365
    %1367 = vadd.xlane.f32.xlu0 %v1352
    %v1368 = vpop.xlane.xlu0 %1367
    %v1369 = vlog2.pop %v1354
    %v1370 = vmul.f32 %v1369, 0.6931472
    %v1371 = vlog2.pop %v1356
    %v1372 = vmul.f32 %v1371, 0.6931472
    %v1373 = vlog2.pop %v1358
    %v1374 = vmul.f32 %v1373, 0.6931472
    %v1375 = vlog2.pop %v1360
    %v1376 = vmul.f32 %v1375, 0.6931472
    %v1377 = vlog2.pop %v1362
    %v1378 = vmul.f32 %v1377, 0.6931472
    %v1379 = vlog2.pop %v1364
    %v1380 = vmul.f32 %v1379, 0.6931472
    %v1381 = vlog2.pop %v1366
    %v1382 = vmul.f32 %v1381, 0.6931472
    %v1383 = vlog2.pop %v1368
    %v1384 = vmul.f32 %v1383, 0.6931472
    %v1385 = vsub.f32 %v1329, %v1370
    %v1386 = vsub.f32 %v1330, %v1372
    %v1387 = vsub.f32 %v1331, %v1374
    %v1388 = vsub.f32 %v1332, %v1376
    %v1389 = vsub.f32 %v1333, %v1378
    %v1390 = vsub.f32 %v1334, %v1380
    %v1391 = vsub.f32 %v1335, %v1382
    %v1392 = vsub.f32 %v1336, %v1384
    %1393 = vst [vmem:[#allocation9] sm:$0xff] %v1385
    %1394 = vst [vmem:[#allocation9 + $0x8] sm:$0xff] %v1386
    %1395 = vst [vmem:[#allocation9 + $0x10] sm:$0xff] %v1387
    %1396 = vst [vmem:[#allocation9 + $0x18] sm:$0xff] %v1388
    %1397 = vst [vmem:[#allocation9 + $0x20] sm:$0xff] %v1389
    %1398 = vst [vmem:[#allocation9 + $0x28] sm:$0xff] %v1390
    %1399 = vst [vmem:[#allocation9 + $0x30] sm:$0xff] %v1391
    %1400 = vst [vmem:[#allocation9 + $0x38] sm:$0xff] %v1392
    // Predicated region
    $region38: #{tpu_custom_call.1} parent=1 // pred_check
      _
    $region39: #{tpu_custom_call.1} parent=1 // pred_check_branch
      %1402 = sbr.rel (0) target = $region41
    $region40: #{tpu_custom_call.1} parent=1 // pred_region
      %s1404 = ssub.s32 1024, 1024
      %1405 = vsyncadd [#allocation6], %s1404
      %s1406 = sshll.u32 [#allocation9], 4
      %s1407 = int_to_ptr.vmem [resolvable:$true] %s1406
      %1412 = dma.vmem_to_hbm [thread:$0]  %s1407, 1024, %s7, [#allocation6], 128, 128, 8
    $region41: #{tpu_custom_call.1} parent=1 // pred_fallthru
      _
    // Predicated region
    $region42: #{tpu_custom_call.1} parent=1 // pred_check
      _
    $region43: #{tpu_custom_call.1} parent=1 // pred_check_branch
      %1414 = sbr.rel (0) target = $region45
    $region44: #{tpu_custom_call.1} parent=1 // pred_region
      %1415 = dma.done [#allocation6], 1024
    $region45: #{tpu_custom_call.1} parent=1 // pred_fallthru
      _
    %1416 = vsyncpa [#allocation5], 1
    %1417 = vsyncpa [#allocation8], 1
    %1418 = vsyncpa [#allocation6], 1

</llo_original>
